<compile_context>
chip_gen: v5e
topology: v5e:2x2
jax: 0.10.0
libtpu: 0.0.40
codegen_flags: <defaults>
</compile_context>

<pallas_src>
import functools
import math

import jax
import jax.numpy as jnp
from jax import lax
from jax.experimental import pallas as pl
from jax.experimental.pallas import tpu as pltpu


def bert_layer_distance_kernel(
    hs_q_ref, hs_kv_ref, amask_ref, relmask_ref,
    wq_ref, bq_ref, wk_ref, bk_ref, wv_ref, bv_ref,
    dist1_ref,
    wao_ref, bao_ref, ln1g_ref, ln1b_ref,
    wi_ref, bi_ref, wo_ref, bo_ref, ln2g_ref, ln2b_ref,
    out_ref,
    *, inv_sqrt_d, ln_eps):
    f32 = jnp.float32
    bf16 = jnp.bfloat16

    xq = hs_q_ref[0]                        # (TQ, H) f32 -- residual path stays f32
    xkv = hs_kv_ref[0]                      # (S,  H) f32
    xq_b = xq.astype(bf16)
    xkv_b = xkv.astype(bf16)

    # ---- projections (bf16 MXU operands, f32 accumulate); scale folded into q ----
    q = (jnp.dot(xq_b, wq_ref[...], preferred_element_type=f32)
         + bq_ref[...]) * inv_sqrt_d                                   # (TQ, H)
    k = jnp.dot(xkv_b, wk_ref[...], preferred_element_type=f32) + bk_ref[...]
    v = jnp.dot(xkv_b, wv_ref[...], preferred_element_type=f32) + bv_ref[...]
    q_b, k_b, v_b = q.astype(bf16), k.astype(bf16), v.astype(bf16)

    # ---- attention scores: q @ k^T without an explicit transpose ----
    dn = (((1,), (1,)), ((), ()))
    scores = lax.dot_general(q_b, k_b, dn, preferred_element_type=f32)  # (TQ, S)

    # ---- distance bias: gather(word_dot_distance, rel) * (rel==1)
    #      == (q @ dist_w[1]) broadcast where rel==1, 0 elsewhere.      (TQ, 1)
    wdd1 = jnp.sum(q * dist1_ref[...], axis=-1, keepdims=True)
    scores = scores + wdd1 * relmask_ref[0].astype(f32)                 # (TQ, S)

    # ---- additive BERT mask + softmax (f32) ----
    scores = scores + amask_ref[0]                                      # (1, S) bcast
    scores = scores - jnp.max(scores, axis=-1, keepdims=True)
    p = jnp.exp(scores)
    probs = p * pl.reciprocal(jnp.sum(p, axis=-1, keepdims=True), approx=True)
    # attention dropout: eval mode -> identity; head_mask is None

    context = jnp.dot(probs.astype(bf16), v_b, preferred_element_type=f32)  # (TQ, H)

    # ---- BertSelfOutput: dense + (dropout) + residual + LayerNorm ----
    ao = jnp.dot(context.astype(bf16), wao_ref[...],
                 preferred_element_type=f32) + bao_ref[...]
    h1 = ao + xq
    mu1 = jnp.mean(h1, axis=-1, keepdims=True)
    var1 = jnp.mean(h1 * h1, axis=-1, keepdims=True) - mu1 * mu1        # one pass
    h1 = (h1 - mu1) * lax.rsqrt(var1 + ln_eps) * ln1g_ref[...] + ln1b_ref[...]

    # ---- BertIntermediate: dense + gelu (erf form, as in original BERT) ----
    inter = jnp.dot(h1.astype(bf16), wi_ref[...],
                    preferred_element_type=f32) + bi_ref[...]
    inter = inter * 0.5 * (1.0 + lax.erf(inter * (1.0 / math.sqrt(2.0))))

    # ---- BertOutput: dense + (dropout) + residual + LayerNorm ----
    out = jnp.dot(inter.astype(bf16), wo_ref[...],
                  preferred_element_type=f32) + bo_ref[...]
    h2 = out + h1
    mu2 = jnp.mean(h2, axis=-1, keepdims=True)
    var2 = jnp.mean(h2 * h2, axis=-1, keepdims=True) - mu2 * mu2
    out_ref[0] = (h2 - mu2) * lax.rsqrt(var2 + ln_eps) * ln2g_ref[...] + ln2b_ref[...]


def bert_layer_distance(hidden_states, attention_mask, word_word_relation, params,
                        *, ln_eps=1e-12, tq=None):
    B, S, H = hidden_states.shape
    I = params["w_inter"].shape[1]

    if tq is None:
        tq = 128 if S % 128 == 0 else S
    assert S % tq == 0, "sequence length must be divisible by the query tile"
    n_q = S // tq

    f32, bf16 = jnp.float32, jnp.bfloat16
    hs = hidden_states.astype(f32)
    amask = attention_mask.reshape(B, 1, S).astype(f32)

    # Only (rel == 1) survives algebraically, so ship a compact mask instead of
    # the int32 relation tensor (bf16 when the query tile is 16-sublane aligned).
    mask_dtype = bf16 if (tq % 16 == 0 or tq == S) else f32
    relmask = (word_word_relation == 1).astype(mask_dtype)              # (B, S, S)

    # Matmul operands in bf16 (f32 accumulate in-kernel); biases / LN params f32.
    wq = params["wq"].astype(bf16)
    wk = params["wk"].astype(bf16)
    wv = params["wv"].astype(bf16)
    wao = params["w_ao"].astype(bf16)
    wi = params["w_inter"].astype(bf16)
    wo = params["w_out"].astype(bf16)
    dist1 = params["dist_w"][1:2].astype(f32)   # only embedding row 1 is ever selected

    def rep(shape):
        nd = len(shape)
        return pl.BlockSpec(shape, lambda b, qi, nd=nd: (0,) * nd)

    in_specs = [
        pl.BlockSpec((1, tq, H), lambda b, qi: (b, qi, 0)),   # hidden_states (query rows)
        pl.BlockSpec((1, S, H), lambda b, qi: (b, 0, 0)),     # hidden_states (k/v, full seq)
        pl.BlockSpec((1, 1, S), lambda b, qi: (b, 0, 0)),     # additive attention mask
        pl.BlockSpec((1, tq, S), lambda b, qi: (b, qi, 0)),   # (rel == 1) mask rows
        rep((H, H)), rep((1, H)),                             # query
        rep((H, H)), rep((1, H)),                             # key
        rep((H, H)), rep((1, H)),                             # value
        rep((1, H)),                                          # distance embedding row 1
        rep((H, H)), rep((1, H)),                             # self-output dense
        rep((1, H)), rep((1, H)),                             # LayerNorm 1
        rep((H, I)), rep((1, I)),                             # intermediate dense
        rep((I, H)), rep((1, H)),                             # output dense
        rep((1, H)), rep((1, H)),                             # LayerNorm 2
    ]

    kernel = functools.partial(
        bert_layer_distance_kernel,
        inv_sqrt_d=1.0 / math.sqrt(H),   # single head -> head_size == hidden_size
        ln_eps=ln_eps)

    return pl.pallas_call(
        kernel,
        out_shape=jax.ShapeDtypeStruct((B, S, H), f32),
        grid=(B, n_q),
        in_specs=in_specs,
        out_specs=pl.BlockSpec((1, tq, H), lambda b, qi: (b, qi, 0)),
        compiler_params=pltpu.CompilerParams(
            dimension_semantics=("parallel", "parallel"),
            vmem_limit_bytes=64 * 1024 * 1024),
    )(hs, hs, amask, relmask,
      wq, params["bq"], wk, params["bk"], wv, params["bv"], dist1,
      wao, params["b_ao"], params["ln1_g"], params["ln1_b"],
      wi, params["b_inter"], wo, params["b_out"],
      params["ln2_g"], params["ln2_b"])


def init_params(key, H, I, DT):
    ks = jax.random.split(key, 7)
    std = 0.02

    def lin(k, shape):
        return (std * jax.random.normal(k, shape)).astype(jnp.float32)

    dist_w = lin(ks[6], (DT, H)).at[0].set(0.0)     # padding_idx=0 row zeroed
    return {
        "wq": lin(ks[0], (H, H)), "bq": jnp.zeros((1, H), jnp.float32),
        "wk": lin(ks[1], (H, H)), "bk": jnp.zeros((1, H), jnp.float32),
        "wv": lin(ks[2], (H, H)), "bv": jnp.zeros((1, H), jnp.float32),
        "dist_w": dist_w,
        "w_ao": lin(ks[3], (H, H)), "b_ao": jnp.zeros((1, H), jnp.float32),
        "ln1_g": jnp.ones((1, H), jnp.float32), "ln1_b": jnp.zeros((1, H), jnp.float32),
        "w_inter": lin(ks[4], (H, I)), "b_inter": jnp.zeros((1, I), jnp.float32),
        "w_out": lin(ks[5], (I, H)), "b_out": jnp.zeros((1, H), jnp.float32),
        "ln2_g": jnp.ones((1, H), jnp.float32), "ln2_b": jnp.zeros((1, H), jnp.float32),
    }


if __name__ == "__main__":
    # config: hidden_size=128 (lane-dense output), num_attention_heads=1 (forced by
    # the distance matmul shapes), intermediate_size=256, distance_type=8,
    # batch=2, seq=32, query tile=16  ->  grid (2, 2)
    B, S, H, I, DT = 2, 32, 128, 256, 8

    key = jax.random.PRNGKey(0)
    k_hs, k_rel, k_p = jax.random.split(key, 3)

    hidden_states = jax.random.normal(k_hs, (B, S, H), jnp.float32)

    # standard additive BERT mask (B, 1, 1, S): 0 = attend, -10000 = masked
    valid_len = jnp.array([[S], [S - 5]], jnp.int32)                 # (B, 1)
    keep = (jnp.arange(S)[None, :] < valid_len).astype(jnp.float32)  # (B, S)
    attention_mask = ((1.0 - keep) * -10000.0).reshape(B, 1, 1, S)

    word_word_relation = jax.random.randint(k_rel, (B, S, S), 0, DT, dtype=jnp.int32)

    params = init_params(k_p, H, I, DT)

    out = bert_layer_distance(hidden_states, attention_mask, word_word_relation,
                              params, tq=16)
    jax.block_until_ready(out)
    assert out.shape == (B, S, H)
    print("KERNEL_OK")
</pallas_src>

<mosaic_0001>
module attributes {stable_mosaic.version = 11 : i64} {
  func.func @bert_layer_distance_kernel(%arg0: i32, %arg1: i32, %arg2: memref<1x16x128xf32, #tpu.memory_space<vmem>>, %arg3: memref<1x32x128xf32, #tpu.memory_space<vmem>>, %arg4: memref<1x1x32xf32, #tpu.memory_space<vmem>>, %arg5: memref<1x16x32xbf16, #tpu.memory_space<vmem>>, %arg6: memref<128x128xbf16, #tpu.memory_space<vmem>>, %arg7: memref<1x128xf32, #tpu.memory_space<vmem>>, %arg8: memref<128x128xbf16, #tpu.memory_space<vmem>>, %arg9: memref<1x128xf32, #tpu.memory_space<vmem>>, %arg10: memref<128x128xbf16, #tpu.memory_space<vmem>>, %arg11: memref<1x128xf32, #tpu.memory_space<vmem>>, %arg12: memref<1x128xf32, #tpu.memory_space<vmem>>, %arg13: memref<128x128xbf16, #tpu.memory_space<vmem>>, %arg14: memref<1x128xf32, #tpu.memory_space<vmem>>, %arg15: memref<1x128xf32, #tpu.memory_space<vmem>>, %arg16: memref<1x128xf32, #tpu.memory_space<vmem>>, %arg17: memref<128x256xbf16, #tpu.memory_space<vmem>>, %arg18: memref<1x256xf32, #tpu.memory_space<vmem>>, %arg19: memref<256x128xbf16, #tpu.memory_space<vmem>>, %arg20: memref<1x128xf32, #tpu.memory_space<vmem>>, %arg21: memref<1x128xf32, #tpu.memory_space<vmem>>, %arg22: memref<1x128xf32, #tpu.memory_space<vmem>>, %arg23: memref<1x16x128xf32, #tpu.memory_space<vmem>>) attributes {dimension_semantics = [#tpu.dimension_semantics<parallel>, #tpu.dimension_semantics<parallel>], iteration_bounds = array<i64: 2, 2>, scalar_prefetch = 0 : i64, scratch_operands = 0 : i64, tpu.core_type = #tpu.core_type<tc>, window_params = [{transform_indices = @transform_0, window_bounds = array<i64: 1, 16, 128>}, {transform_indices = @transform_1, window_bounds = array<i64: 1, 32, 128>}, {transform_indices = @transform_2, window_bounds = array<i64: 1, 1, 32>}, {transform_indices = @transform_3, window_bounds = array<i64: 1, 16, 32>}, {pipeline_mode = #tpu.pipeline_mode<synchronous>, transform_indices = @transform_4, window_bounds = array<i64: 128, 128>}, {pipeline_mode = #tpu.pipeline_mode<synchronous>, transform_indices = @transform_5, window_bounds = array<i64: 1, 128>}, {pipeline_mode = #tpu.pipeline_mode<synchronous>, transform_indices = @transform_6, window_bounds = array<i64: 128, 128>}, {pipeline_mode = #tpu.pipeline_mode<synchronous>, transform_indices = @transform_7, window_bounds = array<i64: 1, 128>}, {pipeline_mode = #tpu.pipeline_mode<synchronous>, transform_indices = @transform_8, window_bounds = array<i64: 128, 128>}, {pipeline_mode = #tpu.pipeline_mode<synchronous>, transform_indices = @transform_9, window_bounds = array<i64: 1, 128>}, {pipeline_mode = #tpu.pipeline_mode<synchronous>, transform_indices = @transform_10, window_bounds = array<i64: 1, 128>}, {pipeline_mode = #tpu.pipeline_mode<synchronous>, transform_indices = @transform_11, window_bounds = array<i64: 128, 128>}, {pipeline_mode = #tpu.pipeline_mode<synchronous>, transform_indices = @transform_12, window_bounds = array<i64: 1, 128>}, {pipeline_mode = #tpu.pipeline_mode<synchronous>, transform_indices = @transform_13, window_bounds = array<i64: 1, 128>}, {pipeline_mode = #tpu.pipeline_mode<synchronous>, transform_indices = @transform_14, window_bounds = array<i64: 1, 128>}, {pipeline_mode = #tpu.pipeline_mode<synchronous>, transform_indices = @transform_15, window_bounds = array<i64: 128, 256>}, {pipeline_mode = #tpu.pipeline_mode<synchronous>, transform_indices = @transform_16, window_bounds = array<i64: 1, 256>}, {pipeline_mode = #tpu.pipeline_mode<synchronous>, transform_indices = @transform_17, window_bounds = array<i64: 256, 128>}, {pipeline_mode = #tpu.pipeline_mode<synchronous>, transform_indices = @transform_18, window_bounds = array<i64: 1, 128>}, {pipeline_mode = #tpu.pipeline_mode<synchronous>, transform_indices = @transform_19, window_bounds = array<i64: 1, 128>}, {pipeline_mode = #tpu.pipeline_mode<synchronous>, transform_indices = @transform_20, window_bounds = array<i64: 1, 128>}, {transform_indices = @transform_21, window_bounds = array<i64: 1, 16, 128>}]} {
    %c0 = arith.constant 0 : index
    %c0_0 = arith.constant 0 : index
    %c0_1 = arith.constant 0 : index
    %0 = vector.load %arg2[%c0, %c0_0, %c0_1] : memref<1x16x128xf32, #tpu.memory_space<vmem>>, vector<1x16x128xf32>
    %1 = vector.shape_cast %0 : vector<1x16x128xf32> to vector<16x128xf32>
    %c0_2 = arith.constant 0 : index
    %c0_3 = arith.constant 0 : index
    %c0_4 = arith.constant 0 : index
    %2 = vector.load %arg3[%c0_2, %c0_3, %c0_4] : memref<1x32x128xf32, #tpu.memory_space<vmem>>, vector<1x32x128xf32>
    %3 = vector.shape_cast %2 : vector<1x32x128xf32> to vector<32x128xf32>
    %4 = arith.truncf %1 : vector<16x128xf32> to vector<16x128xbf16>
    %5 = arith.truncf %3 : vector<32x128xf32> to vector<32x128xbf16>
    %c0_5 = arith.constant 0 : index
    %c0_6 = arith.constant 0 : index
    %6 = vector.load %arg6[%c0_5, %c0_6] : memref<128x128xbf16, #tpu.memory_space<vmem>>, vector<128x128xbf16>
    %cst = arith.constant dense<0.000000e+00> : vector<16x128xf32>
    %7 = tpu.matmul %4, %6, %cst {dimension_numbers = #tpu.dot_dimension_numbers<[1], [0], [0], [1], [0, 0, 1, 1], [], []>} : vector<16x128xbf16>, vector<128x128xbf16>, vector<16x128xf32> -> vector<16x128xf32>
    %c0_7 = arith.constant 0 : index
    %c0_8 = arith.constant 0 : index
    %8 = vector.load %arg7[%c0_7, %c0_8] : memref<1x128xf32, #tpu.memory_space<vmem>>, vector<1x128xf32>
    %9 = vector.broadcast %8 : vector<1x128xf32> to vector<16x128xf32>
    %10 = arith.addf %7, %9 : vector<16x128xf32>
    %cst_9 = arith.constant 0.0883883461 : f32
    %11 = vector.broadcast %cst_9 : f32 to vector<16x128xf32>
    %12 = arith.mulf %10, %11 : vector<16x128xf32>
    %c0_10 = arith.constant 0 : index
    %c0_11 = arith.constant 0 : index
    %13 = vector.load %arg8[%c0_10, %c0_11] : memref<128x128xbf16, #tpu.memory_space<vmem>>, vector<128x128xbf16>
    %cst_12 = arith.constant dense<0.000000e+00> : vector<32x128xf32>
    %14 = tpu.matmul %5, %13, %cst_12 {dimension_numbers = #tpu.dot_dimension_numbers<[1], [0], [0], [1], [0, 0, 1, 1], [], []>} : vector<32x128xbf16>, vector<128x128xbf16>, vector<32x128xf32> -> vector<32x128xf32>
    %c0_13 = arith.constant 0 : index
    %c0_14 = arith.constant 0 : index
    %15 = vector.load %arg9[%c0_13, %c0_14] : memref<1x128xf32, #tpu.memory_space<vmem>>, vector<1x128xf32>
    %16 = vector.broadcast %15 : vector<1x128xf32> to vector<32x128xf32>
    %17 = arith.addf %14, %16 : vector<32x128xf32>
    %c0_15 = arith.constant 0 : index
    %c0_16 = arith.constant 0 : index
    %18 = vector.load %arg10[%c0_15, %c0_16] : memref<128x128xbf16, #tpu.memory_space<vmem>>, vector<128x128xbf16>
    %cst_17 = arith.constant dense<0.000000e+00> : vector<32x128xf32>
    %19 = tpu.matmul %5, %18, %cst_17 {dimension_numbers = #tpu.dot_dimension_numbers<[1], [0], [0], [1], [0, 0, 1, 1], [], []>} : vector<32x128xbf16>, vector<128x128xbf16>, vector<32x128xf32> -> vector<32x128xf32>
    %c0_18 = arith.constant 0 : index
    %c0_19 = arith.constant 0 : index
    %20 = vector.load %arg11[%c0_18, %c0_19] : memref<1x128xf32, #tpu.memory_space<vmem>>, vector<1x128xf32>
    %21 = vector.broadcast %20 : vector<1x128xf32> to vector<32x128xf32>
    %22 = arith.addf %19, %21 : vector<32x128xf32>
    %23 = arith.truncf %12 : vector<16x128xf32> to vector<16x128xbf16>
    %24 = arith.truncf %17 : vector<32x128xf32> to vector<32x128xbf16>
    %25 = arith.truncf %22 : vector<32x128xf32> to vector<32x128xbf16>
    %cst_20 = arith.constant dense<0.000000e+00> : vector<16x32xf32>
    %26 = tpu.matmul %23, %24, %cst_20 {dimension_numbers = #tpu.dot_dimension_numbers<[1], [1], [0], [0], [0, 0, 1, 0], [], []>} : vector<16x128xbf16>, vector<32x128xbf16>, vector<16x32xf32> -> vector<16x32xf32>
    %c0_21 = arith.constant 0 : index
    %c0_22 = arith.constant 0 : index
    %27 = vector.load %arg12[%c0_21, %c0_22] : memref<1x128xf32, #tpu.memory_space<vmem>>, vector<1x128xf32>
    %28 = vector.broadcast %27 : vector<1x128xf32> to vector<16x128xf32>
    %29 = arith.mulf %12, %28 : vector<16x128xf32>
    %cst_23 = arith.constant dense<0.000000e+00> : vector<16xf32>
    %30 = vector.multi_reduction <add>, %29, %cst_23 [1] : vector<16x128xf32> to vector<16xf32>
    %31 = vector.shape_cast %30 : vector<16xf32> to vector<16x1xf32>
    %c0_24 = arith.constant 0 : index
    %c0_25 = arith.constant 0 : index
    %c0_26 = arith.constant 0 : index
    %32 = vector.load %arg5[%c0_24, %c0_25, %c0_26] : memref<1x16x32xbf16, #tpu.memory_space<vmem>>, vector<1x16x32xbf16>
    %33 = vector.shape_cast %32 : vector<1x16x32xbf16> to vector<16x32xbf16>
    %34 = arith.extf %33 : vector<16x32xbf16> to vector<16x32xf32>
    %35 = vector.broadcast %31 : vector<16x1xf32> to vector<16x32xf32>
    %36 = arith.mulf %35, %34 : vector<16x32xf32>
    %37 = arith.addf %26, %36 : vector<16x32xf32>
    %c0_27 = arith.constant 0 : index
    %c0_28 = arith.constant 0 : index
    %c0_29 = arith.constant 0 : index
    %38 = vector.load %arg4[%c0_27, %c0_28, %c0_29] : memref<1x1x32xf32, #tpu.memory_space<vmem>>, vector<1x1x32xf32>
    %39 = vector.shape_cast %38 : vector<1x1x32xf32> to vector<1x32xf32>
    %40 = vector.broadcast %39 : vector<1x32xf32> to vector<16x32xf32>
    %41 = arith.addf %37, %40 : vector<16x32xf32>
    %cst_30 = arith.constant dense<0xFF800000> : vector<16xf32>
    %42 = vector.multi_reduction <maximumf>, %41, %cst_30 [1] : vector<16x32xf32> to vector<16xf32>
    %43 = vector.shape_cast %42 : vector<16xf32> to vector<16x1xf32>
    %44 = vector.broadcast %43 : vector<16x1xf32> to vector<16x32xf32>
    %45 = arith.subf %41, %44 : vector<16x32xf32>
    %46 = math.exp %45 : vector<16x32xf32>
    %cst_31 = arith.constant dense<0.000000e+00> : vector<16xf32>
    %47 = vector.multi_reduction <add>, %46, %cst_31 [1] : vector<16x32xf32> to vector<16xf32>
    %48 = vector.shape_cast %47 : vector<16xf32> to vector<16x1xf32>
    %49 = tpu.reciprocal %48 {approx = true} : vector<16x1xf32> -> vector<16x1xf32>
    %50 = vector.broadcast %49 : vector<16x1xf32> to vector<16x32xf32>
    %51 = arith.mulf %46, %50 : vector<16x32xf32>
    %52 = arith.truncf %51 : vector<16x32xf32> to vector<16x32xbf16>
    %cst_32 = arith.constant dense<0.000000e+00> : vector<16x128xf32>
    %53 = tpu.matmul %52, %25, %cst_32 {dimension_numbers = #tpu.dot_dimension_numbers<[1], [0], [0], [1], [0, 0, 1, 1], [], []>} : vector<16x32xbf16>, vector<32x128xbf16>, vector<16x128xf32> -> vector<16x128xf32>
    %54 = arith.truncf %53 : vector<16x128xf32> to vector<16x128xbf16>
    %c0_33 = arith.constant 0 : index
    %c0_34 = arith.constant 0 : index
    %55 = vector.load %arg13[%c0_33, %c0_34] : memref<128x128xbf16, #tpu.memory_space<vmem>>, vector<128x128xbf16>
    %cst_35 = arith.constant dense<0.000000e+00> : vector<16x128xf32>
    %56 = tpu.matmul %54, %55, %cst_35 {dimension_numbers = #tpu.dot_dimension_numbers<[1], [0], [0], [1], [0, 0, 1, 1], [], []>} : vector<16x128xbf16>, vector<128x128xbf16>, vector<16x128xf32> -> vector<16x128xf32>
    %c0_36 = arith.constant 0 : index
    %c0_37 = arith.constant 0 : index
    %57 = vector.load %arg14[%c0_36, %c0_37] : memref<1x128xf32, #tpu.memory_space<vmem>>, vector<1x128xf32>
    %58 = vector.broadcast %57 : vector<1x128xf32> to vector<16x128xf32>
    %59 = arith.addf %56, %58 : vector<16x128xf32>
    %60 = arith.addf %59, %1 : vector<16x128xf32>
    %cst_38 = arith.constant dense<0.000000e+00> : vector<16xf32>
    %61 = vector.multi_reduction <add>, %60, %cst_38 [1] : vector<16x128xf32> to vector<16xf32>
    %62 = vector.shape_cast %61 : vector<16xf32> to vector<16x1xf32>
    %cst_39 = arith.constant 1.280000e+02 : f32
    %63 = vector.broadcast %cst_39 : f32 to vector<16x1xf32>
    %64 = arith.divf %62, %63 : vector<16x1xf32>
    %65 = arith.mulf %60, %60 : vector<16x128xf32>
    %cst_40 = arith.constant dense<0.000000e+00> : vector<16xf32>
    %66 = vector.multi_reduction <add>, %65, %cst_40 [1] : vector<16x128xf32> to vector<16xf32>
    %67 = vector.shape_cast %66 : vector<16xf32> to vector<16x1xf32>
    %cst_41 = arith.constant 1.280000e+02 : f32
    %68 = vector.broadcast %cst_41 : f32 to vector<16x1xf32>
    %69 = arith.divf %67, %68 : vector<16x1xf32>
    %70 = arith.mulf %64, %64 : vector<16x1xf32>
    %71 = arith.subf %69, %70 : vector<16x1xf32>
    %72 = vector.broadcast %64 : vector<16x1xf32> to vector<16x128xf32>
    %73 = arith.subf %60, %72 : vector<16x128xf32>
    %cst_42 = arith.constant 9.99999996E-13 : f32
    %74 = vector.broadcast %cst_42 : f32 to vector<16x1xf32>
    %75 = arith.addf %71, %74 : vector<16x1xf32>
    %76 = math.rsqrt %75 : vector<16x1xf32>
    %77 = vector.broadcast %76 : vector<16x1xf32> to vector<16x128xf32>
    %78 = arith.mulf %73, %77 : vector<16x128xf32>
    %c0_43 = arith.constant 0 : index
    %c0_44 = arith.constant 0 : index
    %79 = vector.load %arg15[%c0_43, %c0_44] : memref<1x128xf32, #tpu.memory_space<vmem>>, vector<1x128xf32>
    %80 = vector.broadcast %79 : vector<1x128xf32> to vector<16x128xf32>
    %81 = arith.mulf %78, %80 : vector<16x128xf32>
    %c0_45 = arith.constant 0 : index
    %c0_46 = arith.constant 0 : index
    %82 = vector.load %arg16[%c0_45, %c0_46] : memref<1x128xf32, #tpu.memory_space<vmem>>, vector<1x128xf32>
    %83 = vector.broadcast %82 : vector<1x128xf32> to vector<16x128xf32>
    %84 = arith.addf %81, %83 : vector<16x128xf32>
    %85 = arith.truncf %84 : vector<16x128xf32> to vector<16x128xbf16>
    %c0_47 = arith.constant 0 : index
    %c0_48 = arith.constant 0 : index
    %86 = vector.load %arg17[%c0_47, %c0_48] : memref<128x256xbf16, #tpu.memory_space<vmem>>, vector<128x256xbf16>
    %cst_49 = arith.constant dense<0.000000e+00> : vector<16x256xf32>
    %87 = tpu.matmul %85, %86, %cst_49 {dimension_numbers = #tpu.dot_dimension_numbers<[1], [0], [0], [1], [0, 0, 1, 1], [], []>} : vector<16x128xbf16>, vector<128x256xbf16>, vector<16x256xf32> -> vector<16x256xf32>
    %c0_50 = arith.constant 0 : index
    %c0_51 = arith.constant 0 : index
    %88 = vector.load %arg18[%c0_50, %c0_51] : memref<1x256xf32, #tpu.memory_space<vmem>>, vector<1x256xf32>
    %89 = vector.broadcast %88 : vector<1x256xf32> to vector<16x256xf32>
    %90 = arith.addf %87, %89 : vector<16x256xf32>
    %cst_52 = arith.constant 5.000000e-01 : f32
    %91 = vector.broadcast %cst_52 : f32 to vector<16x256xf32>
    %92 = arith.mulf %90, %91 : vector<16x256xf32>
    %cst_53 = arith.constant 0.707106769 : f32
    %93 = vector.broadcast %cst_53 : f32 to vector<16x256xf32>
    %94 = arith.mulf %90, %93 : vector<16x256xf32>
    %95 = math.erf %94 : vector<16x256xf32>
    %cst_54 = arith.constant 1.000000e+00 : f32
    %96 = vector.broadcast %cst_54 : f32 to vector<16x256xf32>
    %97 = arith.addf %96, %95 : vector<16x256xf32>
    %98 = arith.mulf %92, %97 : vector<16x256xf32>
    %99 = arith.truncf %98 : vector<16x256xf32> to vector<16x256xbf16>
    %c0_55 = arith.constant 0 : index
    %c0_56 = arith.constant 0 : index
    %100 = vector.load %arg19[%c0_55, %c0_56] : memref<256x128xbf16, #tpu.memory_space<vmem>>, vector<256x128xbf16>
    %cst_57 = arith.constant dense<0.000000e+00> : vector<16x128xf32>
    %101 = tpu.matmul %99, %100, %cst_57 {dimension_numbers = #tpu.dot_dimension_numbers<[1], [0], [0], [1], [0, 0, 1, 1], [], []>} : vector<16x256xbf16>, vector<256x128xbf16>, vector<16x128xf32> -> vector<16x128xf32>
    %c0_58 = arith.constant 0 : index
    %c0_59 = arith.constant 0 : index
    %102 = vector.load %arg20[%c0_58, %c0_59] : memref<1x128xf32, #tpu.memory_space<vmem>>, vector<1x128xf32>
    %103 = vector.broadcast %102 : vector<1x128xf32> to vector<16x128xf32>
    %104 = arith.addf %101, %103 : vector<16x128xf32>
    %105 = arith.addf %104, %84 : vector<16x128xf32>
    %cst_60 = arith.constant dense<0.000000e+00> : vector<16xf32>
    %106 = vector.multi_reduction <add>, %105, %cst_60 [1] : vector<16x128xf32> to vector<16xf32>
    %107 = vector.shape_cast %106 : vector<16xf32> to vector<16x1xf32>
    %cst_61 = arith.constant 1.280000e+02 : f32
    %108 = vector.broadcast %cst_61 : f32 to vector<16x1xf32>
    %109 = arith.divf %107, %108 : vector<16x1xf32>
    %110 = arith.mulf %105, %105 : vector<16x128xf32>
    %cst_62 = arith.constant dense<0.000000e+00> : vector<16xf32>
    %111 = vector.multi_reduction <add>, %110, %cst_62 [1] : vector<16x128xf32> to vector<16xf32>
    %112 = vector.shape_cast %111 : vector<16xf32> to vector<16x1xf32>
    %cst_63 = arith.constant 1.280000e+02 : f32
    %113 = vector.broadcast %cst_63 : f32 to vector<16x1xf32>
    %114 = arith.divf %112, %113 : vector<16x1xf32>
    %115 = arith.mulf %109, %109 : vector<16x1xf32>
    %116 = arith.subf %114, %115 : vector<16x1xf32>
    %117 = vector.broadcast %109 : vector<16x1xf32> to vector<16x128xf32>
    %118 = arith.subf %105, %117 : vector<16x128xf32>
    %cst_64 = arith.constant 9.99999996E-13 : f32
    %119 = vector.broadcast %cst_64 : f32 to vector<16x1xf32>
    %120 = arith.addf %116, %119 : vector<16x1xf32>
    %121 = math.rsqrt %120 : vector<16x1xf32>
    %122 = vector.broadcast %121 : vector<16x1xf32> to vector<16x128xf32>
    %123 = arith.mulf %118, %122 : vector<16x128xf32>
    %c0_65 = arith.constant 0 : index
    %c0_66 = arith.constant 0 : index
    %124 = vector.load %arg21[%c0_65, %c0_66] : memref<1x128xf32, #tpu.memory_space<vmem>>, vector<1x128xf32>
    %125 = vector.broadcast %124 : vector<1x128xf32> to vector<16x128xf32>
    %126 = arith.mulf %123, %125 : vector<16x128xf32>
    %c0_67 = arith.constant 0 : index
    %c0_68 = arith.constant 0 : index
    %127 = vector.load %arg22[%c0_67, %c0_68] : memref<1x128xf32, #tpu.memory_space<vmem>>, vector<1x128xf32>
    %128 = vector.broadcast %127 : vector<1x128xf32> to vector<16x128xf32>
    %129 = arith.addf %126, %128 : vector<16x128xf32>
    %c0_69 = arith.constant 0 : index
    %c0_70 = arith.constant 0 : index
    %c0_71 = arith.constant 0 : index
    %130 = vector.load %arg23[%c0_69, %c0_70, %c0_71] : memref<1x16x128xf32, #tpu.memory_space<vmem>>, vector<1x16x128xf32>
    %131 = vector.shape_cast %130 : vector<1x16x128xf32> to vector<16x128xf32>
    %132 = vector.shape_cast %129 : vector<16x128xf32> to vector<1x16x128xf32>
    tpu.vector_store %arg23[%c0_69, %c0_70, %c0_71], %132 {strides = array<i32>} : memref<1x16x128xf32, #tpu.memory_space<vmem>>, vector<1x16x128xf32>,
    return
  }
  func.func @transform_0(%arg0: i32, %arg1: i32) -> (i32, i32, i32) {
    %c0_i32 = arith.constant 0 : i32
    %c0_i32_0 = arith.constant 0 : i32
    return %arg0, %arg1, %c0_i32 : i32, i32, i32
  }
  func.func @transform_1(%arg0: i32, %arg1: i32) -> (i32, i32, i32) {
    %c0_i32 = arith.constant 0 : i32
    %c0_i32_0 = arith.constant 0 : i32
    %c0_i32_1 = arith.constant 0 : i32
    return %arg0, %c0_i32, %c0_i32_0 : i32, i32, i32
  }
  func.func @transform_2(%arg0: i32, %arg1: i32) -> (i32, i32, i32) {
    %c0_i32 = arith.constant 0 : i32
    %c0_i32_0 = arith.constant 0 : i32
    %c0_i32_1 = arith.constant 0 : i32
    return %arg0, %c0_i32, %c0_i32_0 : i32, i32, i32
  }
  func.func @transform_3(%arg0: i32, %arg1: i32) -> (i32, i32, i32) {
    %c0_i32 = arith.constant 0 : i32
    %c0_i32_0 = arith.constant 0 : i32
    return %arg0, %arg1, %c0_i32 : i32, i32, i32
  }
  func.func @transform_4(%arg0: i32, %arg1: i32) -> (i32, i32) {
    %c0_i32 = arith.constant 0 : i32
    %c0_i32_0 = arith.constant 0 : i32
    %c0_i32_1 = arith.constant 0 : i32
    return %c0_i32, %c0_i32_0 : i32, i32
  }
  func.func @transform_5(%arg0: i32, %arg1: i32) -> (i32, i32) {
    %c0_i32 = arith.constant 0 : i32
    %c0_i32_0 = arith.constant 0 : i32
    %c0_i32_1 = arith.constant 0 : i32
    return %c0_i32, %c0_i32_0 : i32, i32
  }
  func.func @transform_6(%arg0: i32, %arg1: i32) -> (i32, i32) {
    %c0_i32 = arith.constant 0 : i32
    %c0_i32_0 = arith.constant 0 : i32
    %c0_i32_1 = arith.constant 0 : i32
    return %c0_i32, %c0_i32_0 : i32, i32
  }
  func.func @transform_7(%arg0: i32, %arg1: i32) -> (i32, i32) {
    %c0_i32 = arith.constant 0 : i32
    %c0_i32_0 = arith.constant 0 : i32
    %c0_i32_1 = arith.constant 0 : i32
    return %c0_i32, %c0_i32_0 : i32, i32
  }
  func.func @transform_8(%arg0: i32, %arg1: i32) -> (i32, i32) {
    %c0_i32 = arith.constant 0 : i32
    %c0_i32_0 = arith.constant 0 : i32
    %c0_i32_1 = arith.constant 0 : i32
    return %c0_i32, %c0_i32_0 : i32, i32
  }
  func.func @transform_9(%arg0: i32, %arg1: i32) -> (i32, i32) {
    %c0_i32 = arith.constant 0 : i32
    %c0_i32_0 = arith.constant 0 : i32
    %c0_i32_1 = arith.constant 0 : i32
    return %c0_i32, %c0_i32_0 : i32, i32
  }
  func.func @transform_10(%arg0: i32, %arg1: i32) -> (i32, i32) {
    %c0_i32 = arith.constant 0 : i32
    %c0_i32_0 = arith.constant 0 : i32
    %c0_i32_1 = arith.constant 0 : i32
    return %c0_i32, %c0_i32_0 : i32, i32
  }
  func.func @transform_11(%arg0: i32, %arg1: i32) -> (i32, i32) {
    %c0_i32 = arith.constant 0 : i32
    %c0_i32_0 = arith.constant 0 : i32
    %c0_i32_1 = arith.constant 0 : i32
    return %c0_i32, %c0_i32_0 : i32, i32
  }
  func.func @transform_12(%arg0: i32, %arg1: i32) -> (i32, i32) {
    %c0_i32 = arith.constant 0 : i32
    %c0_i32_0 = arith.constant 0 : i32
    %c0_i32_1 = arith.constant 0 : i32
    return %c0_i32, %c0_i32_0 : i32, i32
  }
  func.func @transform_13(%arg0: i32, %arg1: i32) -> (i32, i32) {
    %c0_i32 = arith.constant 0 : i32
    %c0_i32_0 = arith.constant 0 : i32
    %c0_i32_1 = arith.constant 0 : i32
    return %c0_i32, %c0_i32_0 : i32, i32
  }
  func.func @transform_14(%arg0: i32, %arg1: i32) -> (i32, i32) {
    %c0_i32 = arith.constant 0 : i32
    %c0_i32_0 = arith.constant 0 : i32
    %c0_i32_1 = arith.constant 0 : i32
    return %c0_i32, %c0_i32_0 : i32, i32
  }
  func.func @transform_15(%arg0: i32, %arg1: i32) -> (i32, i32) {
    %c0_i32 = arith.constant 0 : i32
    %c0_i32_0 = arith.constant 0 : i32
    %c0_i32_1 = arith.constant 0 : i32
    return %c0_i32, %c0_i32_0 : i32, i32
  }
  func.func @transform_16(%arg0: i32, %arg1: i32) -> (i32, i32) {
    %c0_i32 = arith.constant 0 : i32
    %c0_i32_0 = arith.constant 0 : i32
    %c0_i32_1 = arith.constant 0 : i32
    return %c0_i32, %c0_i32_0 : i32, i32
  }
  func.func @transform_17(%arg0: i32, %arg1: i32) -> (i32, i32) {
    %c0_i32 = arith.constant 0 : i32
    %c0_i32_0 = arith.constant 0 : i32
    %c0_i32_1 = arith.constant 0 : i32
    return %c0_i32, %c0_i32_0 : i32, i32
  }
  func.func @transform_18(%arg0: i32, %arg1: i32) -> (i32, i32) {
    %c0_i32 = arith.constant 0 : i32
    %c0_i32_0 = arith.constant 0 : i32
    %c0_i32_1 = arith.constant 0 : i32
    return %c0_i32, %c0_i32_0 : i32, i32
  }
  func.func @transform_19(%arg0: i32, %arg1: i32) -> (i32, i32) {
    %c0_i32 = arith.constant 0 : i32
    %c0_i32_0 = arith.constant 0 : i32
    %c0_i32_1 = arith.constant 0 : i32
    return %c0_i32, %c0_i32_0 : i32, i32
  }
  func.func @transform_20(%arg0: i32, %arg1: i32) -> (i32, i32) {
    %c0_i32 = arith.constant 0 : i32
    %c0_i32_0 = arith.constant 0 : i32
    %c0_i32_1 = arith.constant 0 : i32
    return %c0_i32, %c0_i32_0 : i32, i32
  }
  func.func @transform_21(%arg0: i32, %arg1: i32) -> (i32, i32, i32) {
    %c0_i32 = arith.constant 0 : i32
    %c0_i32_0 = arith.constant 0 : i32
    return %arg0, %arg1, %c0_i32 : i32, i32, i32
  }
}

</mosaic_0001>

<llo_original>
// kernel: tpu_custom_call.1
$region0: #{tpu_custom_call.1}
  #allocation0 [shape = 'u32[]', space=smem, size = 0x4, offset = 0x4, fixed_abs, tag = 'smem constant byte address 0x4 - core index']
  #allocation1 [shape = 'u32[72,128]{1,0:T(1,128)}', space=vmem, size = 0x9000, scoped, tag = 'internal scratch']
  %s0 = inlined_call_operand.hbm [shape: f32[2,32,128], index: 0, kind: input, shape index: {}]
  %s1 = inlined_call_operand.hbm [shape: f32[2,32,128], index: 1, kind: input, shape index: {}]
  %s2 = inlined_call_operand.hbm [shape: f32[2,1,32], index: 2, kind: input, shape index: {}]
  %s3 = inlined_call_operand.hbm [shape: bf16[2,32,32], index: 3, kind: input, shape index: {}]
  %s4 = inlined_call_operand.hbm [shape: bf16[128,128], index: 4, kind: input, shape index: {}]
  %s5 = inlined_call_operand.vmem [shape: f32[1,128], index: 5, kind: input, shape index: {}]
  %s6 = inlined_call_operand.hbm [shape: bf16[128,128], index: 6, kind: input, shape index: {}]
  %s7 = inlined_call_operand.vmem [shape: f32[1,128], index: 7, kind: input, shape index: {}]
  %s8 = inlined_call_operand.hbm [shape: bf16[128,128], index: 8, kind: input, shape index: {}]
  %s9 = inlined_call_operand.vmem [shape: f32[1,128], index: 9, kind: input, shape index: {}]
  %s10 = inlined_call_operand.vmem [shape: f32[1,128], index: 10, kind: input, shape index: {}]
  %s11 = inlined_call_operand.hbm [shape: bf16[128,128], index: 11, kind: input, shape index: {}]
  %s12 = inlined_call_operand.vmem [shape: f32[1,128], index: 12, kind: input, shape index: {}]
  %s13 = inlined_call_operand.vmem [shape: f32[1,128], index: 13, kind: input, shape index: {}]
  %s14 = inlined_call_operand.vmem [shape: f32[1,128], index: 14, kind: input, shape index: {}]
  %s15 = inlined_call_operand.hbm [shape: bf16[128,256], index: 15, kind: input, shape index: {}]
  %s16 = inlined_call_operand.vmem [shape: f32[1,256], index: 16, kind: input, shape index: {}]
  %s17 = inlined_call_operand.hbm [shape: bf16[256,128], index: 17, kind: input, shape index: {}]
  %s18 = inlined_call_operand.vmem [shape: f32[1,128], index: 18, kind: input, shape index: {}]
  %s19 = inlined_call_operand.vmem [shape: f32[1,128], index: 19, kind: input, shape index: {}]
  %s20 = inlined_call_operand.vmem [shape: f32[1,128], index: 20, kind: input, shape index: {}]
  %s21 = inlined_call_operand.hbm [shape: f32[2,32,128], index: 21, kind: output, shape index: {}]
  %s22 = sld [smem:[#allocation0]]
  $region157: #{tpu_custom_call.1} parent=0
    _
  %s24 = ssub.s32 1, %s22
  %s25 = scalar_select 0, %s24, %s22
  $region1: #{tpu_custom_call.1} parent=0
    #allocation2 [shape = 'u8[16384]{0}', space=vmem, size = 0x4000, scoped, tag = 'input window, operand 0']
    #allocation3 [shape = 's32[2]{0}', space=sflag, size = 0x8, scoped, tag = 'scoped memory for tpu_custom_call.1']
    #allocation4 [shape = 's32[2]{0}', space=sflag, size = 0x8, scoped, tag = 'scoped memory for tpu_custom_call.1']
    #allocation5 [shape = 'u8[32768]{0}', space=vmem, size = 0x8000, scoped, tag = 'input window, operand 1']
    #allocation6 [shape = 's32[2]{0}', space=sflag, size = 0x8, scoped, tag = 'scoped memory for tpu_custom_call.1']
    #allocation7 [shape = 'u8[1024]{0}', space=vmem, size = 0x400, scoped, tag = 'input window, operand 2']
    #allocation8 [shape = 'u8[8192]{0}', space=vmem, size = 0x2000, scoped, tag = 'input window, operand 3']
    #allocation9 [shape = 's32[2]{0}', space=sflag, size = 0x8, scoped, tag = 'scoped memory for tpu_custom_call.1']
    #allocation10 [shape = 'u8[32768]{0}', space=vmem, size = 0x8000, scoped, tag = 'input window, operand 4, single buffered']
    #allocation11 [shape = 'u8[32768]{0}', space=vmem, size = 0x8000, scoped, tag = 'input window, operand 6, single buffered']
    #allocation12 [shape = 's32[1]{0}', space=sflag, size = 0x4, scoped, tag = 'scoped memory for tpu_custom_call.1']
    #allocation13 [shape = 'u8[32768]{0}', space=vmem, size = 0x8000, scoped, tag = 'input window, operand 8, single buffered']
    #allocation14 [shape = 'u8[32768]{0}', space=vmem, size = 0x8000, scoped, tag = 'input window, operand 11, single buffered']
    #allocation15 [shape = 's32[1]{0}', space=sflag, size = 0x4, scoped, tag = 'scoped memory for tpu_custom_call.1']
    #allocation16 [shape = 'u8[65536]{0}', space=vmem, size = 0x10000, scoped, tag = 'input window, operand 15, single buffered']
    #allocation17 [shape = 'u8[65536]{0}', space=vmem, size = 0x10000, scoped, tag = 'input window, operand 17, single buffered']
    #allocation18 [shape = 's32[1]{0}', space=sflag, size = 0x4, scoped, tag = 'scoped memory for tpu_custom_call.1']
    #allocation19 [shape = 'u8[16384]{0}', space=vmem, size = 0x4000, scoped, tag = 'output window, operand 0']
    %26 = vsyncpa [#allocation3], 0
    %s27 = scalar_lea.sflag [#allocation3], 1
    %28 = vsyncpa %s27, 0
    %29 = vsyncpa [#allocation6], 0
    %s30 = scalar_lea.sflag [#allocation6], 1
    %31 = vsyncpa %s30, 0
    %32 = vsyncpa [#allocation9], 0
    %s33 = scalar_lea.sflag [#allocation9], 1
    %34 = vsyncpa %s33, 0
    %35 = vsyncpa [#allocation12], 0
    %36 = vsyncpa [#allocation15], 0
    %37 = vsyncpa [#allocation18], 0
    %38 = vsyncpa [#allocation4], 0
    %s39 = scalar_lea.sflag [#allocation4], 1
    %40 = vsyncpa %s39, 0
    loop: start=0, step=1, limit=6
    $region2: #{tpu_custom_call.1} parent=1 // loop_pre_header
      _
    $region3: #{tpu_custom_call.1} parent=1 // loop_header
      %s42 = sphi 0, %s46
      %p43 = scmp.ge.s32.totalorder %s42, 6
      %s49 = sphi 0, %s61
      %s50 = sphi 0, %s57
      %s51 = sphi 0, %s49
      %s52 = sphi 0, %s50
      %s53 = sphi 0, %s51
      %s54 = sphi 0, %s52
      %s66 = sphi 0, %s68
      %s69 = sphi 0, %s66
      %s70 = sphi 0, %s69
      %s86 = sphi 0, %s70
      %s92 = sphi 0, %s94
      %s95 = sphi 0, %s92
      %s96 = sphi 0, %s95
      %s112 = sphi 0, %s96
      %s118 = sphi 0, %s120
      %s121 = sphi 0, %s118
      %s122 = sphi 0, %s121
      %s138 = sphi 0, %s122
      %s146 = sphi 0, %s148
      %s149 = sphi 0, %s146
      %s150 = sphi 0, %s149
      %s166 = sphi 0, %s150
      %s170 = sphi 0, %s170
      %s172 = sphi 0, %s170
      %s173 = sphi 0, %s172
      %s187 = sphi 0, %s173
      %s191 = sphi 0, %s191
      %s193 = sphi 0, %s191
      %s194 = sphi 0, %s193
      %s208 = sphi 0, %s194
      %s212 = sphi 0, %s212
      %s214 = sphi 0, %s212
      %s215 = sphi 0, %s214
      %s229 = sphi 0, %s215
      %s233 = sphi 0, %s233
      %s235 = sphi 0, %s233
      %s236 = sphi 0, %s235
      %s250 = sphi 0, %s236
      %s254 = sphi 0, %s254
      %s256 = sphi 0, %s254
      %s257 = sphi 0, %s256
      %s271 = sphi 0, %s257
      %s275 = sphi 0, %s275
      %s277 = sphi 0, %s275
      %s278 = sphi 0, %s277
      %s292 = sphi 0, %s278
      %s296 = sphi 0, %s296
      %s298 = sphi 0, %s296
      %s299 = sphi 0, %s298
      %s313 = sphi 0, %s299
      %s317 = sphi 0, %s317
      %s319 = sphi 0, %s317
      %s320 = sphi 0, %s319
      %s334 = sphi 0, %s320
      %s338 = sphi 0, %s338
      %s340 = sphi 0, %s338
      %s341 = sphi 0, %s340
      %s355 = sphi 0, %s341
      %s359 = sphi 0, %s359
      %s361 = sphi 0, %s359
      %s362 = sphi 0, %s361
      %s376 = sphi 0, %s362
      %s380 = sphi 0, %s380
      %s382 = sphi 0, %s380
      %s383 = sphi 0, %s382
      %s397 = sphi 0, %s383
      %s401 = sphi 0, %s401
      %s403 = sphi 0, %s401
      %s404 = sphi 0, %s403
      %s418 = sphi 0, %s404
      %s422 = sphi 0, %s422
      %s424 = sphi 0, %s422
      %s425 = sphi 0, %s424
      %s439 = sphi 0, %s425
      %s443 = sphi 0, %s443
      %s445 = sphi 0, %s443
      %s446 = sphi 0, %s445
      %s460 = sphi 0, %s446
      %s464 = sphi 0, %s464
      %s466 = sphi 0, %s464
      %s467 = sphi 0, %s466
      %s481 = sphi 0, %s467
      %s485 = sphi 0, %s485
      %s487 = sphi 0, %s485
      %s488 = sphi 0, %s487
      %s502 = sphi 0, %s488
      %s506 = sphi 0, %s506
      %s508 = sphi 0, %s506
      %s509 = sphi 0, %s508
      %s523 = sphi 0, %s509
      %s531 = sphi 0, %s533
      %s534 = sphi 0, %s531
      %s535 = sphi 0, %s534
      %s551 = sphi 0, %s535
    $region4: #{tpu_custom_call.1} parent=1 // loop_header_branch
      %45 = sbr.rel (%p43) target = $region8
    $region5: #{tpu_custom_call.1} parent=1 // loop_body
      %s47 = ssub.s32 %s42, 1
      %s48 = ssub.s32 %s42, 2
      %s55 = sadd.s32 1, %s50
      %p56 = scmp.ge.s32.totalorder %s55, 2
      %s57 = scalar_select %p56, 0, %s55
      %s58 = sadd.s32 1, %s49
      %s59 = scalar_select %p56, %s58, %s49
      %p60 = scmp.ge.s32.totalorder %s59, 2
      %s61 = scalar_select %p60, 0, %s59
      %s62 = ssub.s32 %s49, %s61
      %s63 = ssub.s32 %s50, %s57
      %s64 = sor.u32 %s62, %s63
      %p65 = scmp.eq.s32.totalorder %s64, 0
      %s67 = sadd.s32 %s66, 1
      %s68 = scalar_select %p65, %s66, %s67
      %p71 = pneg %p65
      %p72 = scmp.eq.s32.totalorder %s42, 3
      %p73 = por %p71, %p72
      %p74 = scmp.ne.s32.totalorder %s66, %s69
      %p75 = scmp.eq.s32.totalorder %s42, 0
      %p76 = por %p74, %p75
      %p77 = scmp.ne.s32.totalorder %s66, %s69
      %p78 = scmp.eq.s32.totalorder %s47, 3
      %p79 = por %p77, %p78
      %p80 = scmp.ne.s32.totalorder %s69, %s70
      %p81 = scmp.eq.s32.totalorder %s47, 0
      %p82 = por %p80, %p81
      %p83 = scmp.ne.s32.totalorder %s69, %s70
      %p84 = scmp.eq.s32.totalorder %s48, 3
      %p85 = por %p83, %p84
      %p87 = scmp.ne.s32.totalorder %s70, %s86
      %p88 = scmp.eq.s32.totalorder %s48, 0
      %p89 = por %p87, %p88
      %s90 = ssub.s32 %s49, %s61
      %p91 = scmp.eq.s32.totalorder %s90, 0
      %s93 = sadd.s32 %s92, 1
      %s94 = scalar_select %p91, %s92, %s93
      %p97 = pneg %p91
      %p98 = scmp.eq.s32.totalorder %s42, 3
      %p99 = por %p97, %p98
      %p100 = scmp.ne.s32.totalorder %s92, %s95
      %p101 = scmp.eq.s32.totalorder %s42, 0
      %p102 = por %p100, %p101
      %p103 = scmp.ne.s32.totalorder %s92, %s95
      %p104 = scmp.eq.s32.totalorder %s47, 3
      %p105 = por %p103, %p104
      %p106 = scmp.ne.s32.totalorder %s95, %s96
      %p107 = scmp.eq.s32.totalorder %s47, 0
      %p108 = por %p106, %p107
      %p109 = scmp.ne.s32.totalorder %s95, %s96
      %p110 = scmp.eq.s32.totalorder %s48, 3
      %p111 = por %p109, %p110
      %p113 = scmp.ne.s32.totalorder %s96, %s112
      %p114 = scmp.eq.s32.totalorder %s48, 0
      %p115 = por %p113, %p114
      %s116 = ssub.s32 %s49, %s61
      %p117 = scmp.eq.s32.totalorder %s116, 0
      %s119 = sadd.s32 %s118, 1
      %s120 = scalar_select %p117, %s118, %s119
      %p123 = pneg %p117
      %p124 = scmp.eq.s32.totalorder %s42, 3
      %p125 = por %p123, %p124
      %p126 = scmp.ne.s32.totalorder %s118, %s121
      %p127 = scmp.eq.s32.totalorder %s42, 0
      %p128 = por %p126, %p127
      %p129 = scmp.ne.s32.totalorder %s118, %s121
      %p130 = scmp.eq.s32.totalorder %s47, 3
      %p131 = por %p129, %p130
      %p132 = scmp.ne.s32.totalorder %s121, %s122
      %p133 = scmp.eq.s32.totalorder %s47, 0
      %p134 = por %p132, %p133
      %p135 = scmp.ne.s32.totalorder %s121, %s122
      %p136 = scmp.eq.s32.totalorder %s48, 3
      %p137 = por %p135, %p136
      %p139 = scmp.ne.s32.totalorder %s122, %s138
      %p140 = scmp.eq.s32.totalorder %s48, 0
      %p141 = por %p139, %p140
      %s142 = ssub.s32 %s49, %s61
      %s143 = ssub.s32 %s50, %s57
      %s144 = sor.u32 %s142, %s143
      %p145 = scmp.eq.s32.totalorder %s144, 0
      %s147 = sadd.s32 %s146, 1
      %s148 = scalar_select %p145, %s146, %s147
      %p151 = pneg %p145
      %p152 = scmp.eq.s32.totalorder %s42, 3
      %p153 = por %p151, %p152
      %p154 = scmp.ne.s32.totalorder %s146, %s149
      %p155 = scmp.eq.s32.totalorder %s42, 0
      %p156 = por %p154, %p155
      %p157 = scmp.ne.s32.totalorder %s146, %s149
      %p158 = scmp.eq.s32.totalorder %s47, 3
      %p159 = por %p157, %p158
      %p160 = scmp.ne.s32.totalorder %s149, %s150
      %p161 = scmp.eq.s32.totalorder %s47, 0
      %p162 = por %p160, %p161
      %p163 = scmp.ne.s32.totalorder %s149, %s150
      %p164 = scmp.eq.s32.totalorder %s48, 3
      %p165 = por %p163, %p164
      %p167 = scmp.ne.s32.totalorder %s150, %s166
      %p168 = scmp.eq.s32.totalorder %s48, 0
      %p169 = por %p167, %p168
      %s171 = sadd.s32 %s170, 1
      %p174 = scmp.eq.s32.totalorder %s42, 3
      %p175 = scmp.ne.s32.totalorder %s170, %s172
      %p176 = scmp.eq.s32.totalorder %s42, 0
      %p177 = por %p175, %p176
      %p178 = scmp.ne.s32.totalorder %s170, %s172
      %p179 = scmp.eq.s32.totalorder %s47, 3
      %p180 = por %p178, %p179
      %p181 = scmp.ne.s32.totalorder %s172, %s173
      %p182 = scmp.eq.s32.totalorder %s47, 0
      %p183 = por %p181, %p182
      %p184 = scmp.ne.s32.totalorder %s172, %s173
      %p185 = scmp.eq.s32.totalorder %s48, 3
      %p186 = por %p184, %p185
      %p188 = scmp.ne.s32.totalorder %s173, %s187
      %p189 = scmp.eq.s32.totalorder %s48, 0
      %p190 = por %p188, %p189
      %s192 = sadd.s32 %s191, 1
      %p195 = scmp.eq.s32.totalorder %s42, 3
      %p196 = scmp.ne.s32.totalorder %s191, %s193
      %p197 = scmp.eq.s32.totalorder %s42, 0
      %p198 = por %p196, %p197
      %p199 = scmp.ne.s32.totalorder %s191, %s193
      %p200 = scmp.eq.s32.totalorder %s47, 3
      %p201 = por %p199, %p200
      %p202 = scmp.ne.s32.totalorder %s193, %s194
      %p203 = scmp.eq.s32.totalorder %s47, 0
      %p204 = por %p202, %p203
      %p205 = scmp.ne.s32.totalorder %s193, %s194
      %p206 = scmp.eq.s32.totalorder %s48, 3
      %p207 = por %p205, %p206
      %p209 = scmp.ne.s32.totalorder %s194, %s208
      %p210 = scmp.eq.s32.totalorder %s48, 0
      %p211 = por %p209, %p210
      %s213 = sadd.s32 %s212, 1
      %p216 = scmp.eq.s32.totalorder %s42, 3
      %p217 = scmp.ne.s32.totalorder %s212, %s214
      %p218 = scmp.eq.s32.totalorder %s42, 0
      %p219 = por %p217, %p218
      %p220 = scmp.ne.s32.totalorder %s212, %s214
      %p221 = scmp.eq.s32.totalorder %s47, 3
      %p222 = por %p220, %p221
      %p223 = scmp.ne.s32.totalorder %s214, %s215
      %p224 = scmp.eq.s32.totalorder %s47, 0
      %p225 = por %p223, %p224
      %p226 = scmp.ne.s32.totalorder %s214, %s215
      %p227 = scmp.eq.s32.totalorder %s48, 3
      %p228 = por %p226, %p227
      %p230 = scmp.ne.s32.totalorder %s215, %s229
      %p231 = scmp.eq.s32.totalorder %s48, 0
      %p232 = por %p230, %p231
      %s234 = sadd.s32 %s233, 1
      %p237 = scmp.eq.s32.totalorder %s42, 3
      %p238 = scmp.ne.s32.totalorder %s233, %s235
      %p239 = scmp.eq.s32.totalorder %s42, 0
      %p240 = por %p238, %p239
      %p241 = scmp.ne.s32.totalorder %s233, %s235
      %p242 = scmp.eq.s32.totalorder %s47, 3
      %p243 = por %p241, %p242
      %p244 = scmp.ne.s32.totalorder %s235, %s236
      %p245 = scmp.eq.s32.totalorder %s47, 0
      %p246 = por %p244, %p245
      %p247 = scmp.ne.s32.totalorder %s235, %s236
      %p248 = scmp.eq.s32.totalorder %s48, 3
      %p249 = por %p247, %p248
      %p251 = scmp.ne.s32.totalorder %s236, %s250
      %p252 = scmp.eq.s32.totalorder %s48, 0
      %p253 = por %p251, %p252
      %s255 = sadd.s32 %s254, 1
      %p258 = scmp.eq.s32.totalorder %s42, 3
      %p259 = scmp.ne.s32.totalorder %s254, %s256
      %p260 = scmp.eq.s32.totalorder %s42, 0
      %p261 = por %p259, %p260
      %p262 = scmp.ne.s32.totalorder %s254, %s256
      %p263 = scmp.eq.s32.totalorder %s47, 3
      %p264 = por %p262, %p263
      %p265 = scmp.ne.s32.totalorder %s256, %s257
      %p266 = scmp.eq.s32.totalorder %s47, 0
      %p267 = por %p265, %p266
      %p268 = scmp.ne.s32.totalorder %s256, %s257
      %p269 = scmp.eq.s32.totalorder %s48, 3
      %p270 = por %p268, %p269
      %p272 = scmp.ne.s32.totalorder %s257, %s271
      %p273 = scmp.eq.s32.totalorder %s48, 0
      %p274 = por %p272, %p273
      %s276 = sadd.s32 %s275, 1
      %p279 = scmp.eq.s32.totalorder %s42, 3
      %p280 = scmp.ne.s32.totalorder %s275, %s277
      %p281 = scmp.eq.s32.totalorder %s42, 0
      %p282 = por %p280, %p281
      %p283 = scmp.ne.s32.totalorder %s275, %s277
      %p284 = scmp.eq.s32.totalorder %s47, 3
      %p285 = por %p283, %p284
      %p286 = scmp.ne.s32.totalorder %s277, %s278
      %p287 = scmp.eq.s32.totalorder %s47, 0
      %p288 = por %p286, %p287
      %p289 = scmp.ne.s32.totalorder %s277, %s278
      %p290 = scmp.eq.s32.totalorder %s48, 3
      %p291 = por %p289, %p290
      %p293 = scmp.ne.s32.totalorder %s278, %s292
      %p294 = scmp.eq.s32.totalorder %s48, 0
      %p295 = por %p293, %p294
      %s297 = sadd.s32 %s296, 1
      %p300 = scmp.eq.s32.totalorder %s42, 3
      %p301 = scmp.ne.s32.totalorder %s296, %s298
      %p302 = scmp.eq.s32.totalorder %s42, 0
      %p303 = por %p301, %p302
      %p304 = scmp.ne.s32.totalorder %s296, %s298
      %p305 = scmp.eq.s32.totalorder %s47, 3
      %p306 = por %p304, %p305
      %p307 = scmp.ne.s32.totalorder %s298, %s299
      %p308 = scmp.eq.s32.totalorder %s47, 0
      %p309 = por %p307, %p308
      %p310 = scmp.ne.s32.totalorder %s298, %s299
      %p311 = scmp.eq.s32.totalorder %s48, 3
      %p312 = por %p310, %p311
      %p314 = scmp.ne.s32.totalorder %s299, %s313
      %p315 = scmp.eq.s32.totalorder %s48, 0
      %p316 = por %p314, %p315
      %s318 = sadd.s32 %s317, 1
      %p321 = scmp.eq.s32.totalorder %s42, 3
      %p322 = scmp.ne.s32.totalorder %s317, %s319
      %p323 = scmp.eq.s32.totalorder %s42, 0
      %p324 = por %p322, %p323
      %p325 = scmp.ne.s32.totalorder %s317, %s319
      %p326 = scmp.eq.s32.totalorder %s47, 3
      %p327 = por %p325, %p326
      %p328 = scmp.ne.s32.totalorder %s319, %s320
      %p329 = scmp.eq.s32.totalorder %s47, 0
      %p330 = por %p328, %p329
      %p331 = scmp.ne.s32.totalorder %s319, %s320
      %p332 = scmp.eq.s32.totalorder %s48, 3
      %p333 = por %p331, %p332
      %p335 = scmp.ne.s32.totalorder %s320, %s334
      %p336 = scmp.eq.s32.totalorder %s48, 0
      %p337 = por %p335, %p336
      %s339 = sadd.s32 %s338, 1
      %p342 = scmp.eq.s32.totalorder %s42, 3
      %p343 = scmp.ne.s32.totalorder %s338, %s340
      %p344 = scmp.eq.s32.totalorder %s42, 0
      %p345 = por %p343, %p344
      %p346 = scmp.ne.s32.totalorder %s338, %s340
      %p347 = scmp.eq.s32.totalorder %s47, 3
      %p348 = por %p346, %p347
      %p349 = scmp.ne.s32.totalorder %s340, %s341
      %p350 = scmp.eq.s32.totalorder %s47, 0
      %p351 = por %p349, %p350
      %p352 = scmp.ne.s32.totalorder %s340, %s341
      %p353 = scmp.eq.s32.totalorder %s48, 3
      %p354 = por %p352, %p353
      %p356 = scmp.ne.s32.totalorder %s341, %s355
      %p357 = scmp.eq.s32.totalorder %s48, 0
      %p358 = por %p356, %p357
      %s360 = sadd.s32 %s359, 1
      %p363 = scmp.eq.s32.totalorder %s42, 3
      %p364 = scmp.ne.s32.totalorder %s359, %s361
      %p365 = scmp.eq.s32.totalorder %s42, 0
      %p366 = por %p364, %p365
      %p367 = scmp.ne.s32.totalorder %s359, %s361
      %p368 = scmp.eq.s32.totalorder %s47, 3
      %p369 = por %p367, %p368
      %p370 = scmp.ne.s32.totalorder %s361, %s362
      %p371 = scmp.eq.s32.totalorder %s47, 0
      %p372 = por %p370, %p371
      %p373 = scmp.ne.s32.totalorder %s361, %s362
      %p374 = scmp.eq.s32.totalorder %s48, 3
      %p375 = por %p373, %p374
      %p377 = scmp.ne.s32.totalorder %s362, %s376
      %p378 = scmp.eq.s32.totalorder %s48, 0
      %p379 = por %p377, %p378
      %s381 = sadd.s32 %s380, 1
      %p384 = scmp.eq.s32.totalorder %s42, 3
      %p385 = scmp.ne.s32.totalorder %s380, %s382
      %p386 = scmp.eq.s32.totalorder %s42, 0
      %p387 = por %p385, %p386
      %p388 = scmp.ne.s32.totalorder %s380, %s382
      %p389 = scmp.eq.s32.totalorder %s47, 3
      %p390 = por %p388, %p389
      %p391 = scmp.ne.s32.totalorder %s382, %s383
      %p392 = scmp.eq.s32.totalorder %s47, 0
      %p393 = por %p391, %p392
      %p394 = scmp.ne.s32.totalorder %s382, %s383
      %p395 = scmp.eq.s32.totalorder %s48, 3
      %p396 = por %p394, %p395
      %p398 = scmp.ne.s32.totalorder %s383, %s397
      %p399 = scmp.eq.s32.totalorder %s48, 0
      %p400 = por %p398, %p399
      %s402 = sadd.s32 %s401, 1
      %p405 = scmp.eq.s32.totalorder %s42, 3
      %p406 = scmp.ne.s32.totalorder %s401, %s403
      %p407 = scmp.eq.s32.totalorder %s42, 0
      %p408 = por %p406, %p407
      %p409 = scmp.ne.s32.totalorder %s401, %s403
      %p410 = scmp.eq.s32.totalorder %s47, 3
      %p411 = por %p409, %p410
      %p412 = scmp.ne.s32.totalorder %s403, %s404
      %p413 = scmp.eq.s32.totalorder %s47, 0
      %p414 = por %p412, %p413
      %p415 = scmp.ne.s32.totalorder %s403, %s404
      %p416 = scmp.eq.s32.totalorder %s48, 3
      %p417 = por %p415, %p416
      %p419 = scmp.ne.s32.totalorder %s404, %s418
      %p420 = scmp.eq.s32.totalorder %s48, 0
      %p421 = por %p419, %p420
      %s423 = sadd.s32 %s422, 1
      %p426 = scmp.eq.s32.totalorder %s42, 3
      %p427 = scmp.ne.s32.totalorder %s422, %s424
      %p428 = scmp.eq.s32.totalorder %s42, 0
      %p429 = por %p427, %p428
      %p430 = scmp.ne.s32.totalorder %s422, %s424
      %p431 = scmp.eq.s32.totalorder %s47, 3
      %p432 = por %p430, %p431
      %p433 = scmp.ne.s32.totalorder %s424, %s425
      %p434 = scmp.eq.s32.totalorder %s47, 0
      %p435 = por %p433, %p434
      %p436 = scmp.ne.s32.totalorder %s424, %s425
      %p437 = scmp.eq.s32.totalorder %s48, 3
      %p438 = por %p436, %p437
      %p440 = scmp.ne.s32.totalorder %s425, %s439
      %p441 = scmp.eq.s32.totalorder %s48, 0
      %p442 = por %p440, %p441
      %s444 = sadd.s32 %s443, 1
      %p447 = scmp.eq.s32.totalorder %s42, 3
      %p448 = scmp.ne.s32.totalorder %s443, %s445
      %p449 = scmp.eq.s32.totalorder %s42, 0
      %p450 = por %p448, %p449
      %p451 = scmp.ne.s32.totalorder %s443, %s445
      %p452 = scmp.eq.s32.totalorder %s47, 3
      %p453 = por %p451, %p452
      %p454 = scmp.ne.s32.totalorder %s445, %s446
      %p455 = scmp.eq.s32.totalorder %s47, 0
      %p456 = por %p454, %p455
      %p457 = scmp.ne.s32.totalorder %s445, %s446
      %p458 = scmp.eq.s32.totalorder %s48, 3
      %p459 = por %p457, %p458
      %p461 = scmp.ne.s32.totalorder %s446, %s460
      %p462 = scmp.eq.s32.totalorder %s48, 0
      %p463 = por %p461, %p462
      %s465 = sadd.s32 %s464, 1
      %p468 = scmp.eq.s32.totalorder %s42, 3
      %p469 = scmp.ne.s32.totalorder %s464, %s466
      %p470 = scmp.eq.s32.totalorder %s42, 0
      %p471 = por %p469, %p470
      %p472 = scmp.ne.s32.totalorder %s464, %s466
      %p473 = scmp.eq.s32.totalorder %s47, 3
      %p474 = por %p472, %p473
      %p475 = scmp.ne.s32.totalorder %s466, %s467
      %p476 = scmp.eq.s32.totalorder %s47, 0
      %p477 = por %p475, %p476
      %p478 = scmp.ne.s32.totalorder %s466, %s467
      %p479 = scmp.eq.s32.totalorder %s48, 3
      %p480 = por %p478, %p479
      %p482 = scmp.ne.s32.totalorder %s467, %s481
      %p483 = scmp.eq.s32.totalorder %s48, 0
      %p484 = por %p482, %p483
      %s486 = sadd.s32 %s485, 1
      %p489 = scmp.eq.s32.totalorder %s42, 3
      %p490 = scmp.ne.s32.totalorder %s485, %s487
      %p491 = scmp.eq.s32.totalorder %s42, 0
      %p492 = por %p490, %p491
      %p493 = scmp.ne.s32.totalorder %s485, %s487
      %p494 = scmp.eq.s32.totalorder %s47, 3
      %p495 = por %p493, %p494
      %p496 = scmp.ne.s32.totalorder %s487, %s488
      %p497 = scmp.eq.s32.totalorder %s47, 0
      %p498 = por %p496, %p497
      %p499 = scmp.ne.s32.totalorder %s487, %s488
      %p500 = scmp.eq.s32.totalorder %s48, 3
      %p501 = por %p499, %p500
      %p503 = scmp.ne.s32.totalorder %s488, %s502
      %p504 = scmp.eq.s32.totalorder %s48, 0
      %p505 = por %p503, %p504
      %s507 = sadd.s32 %s506, 1
      %p510 = scmp.eq.s32.totalorder %s42, 3
      %p511 = scmp.ne.s32.totalorder %s506, %s508
      %p512 = scmp.eq.s32.totalorder %s42, 0
      %p513 = por %p511, %p512
      %p514 = scmp.ne.s32.totalorder %s506, %s508
      %p515 = scmp.eq.s32.totalorder %s47, 3
      %p516 = por %p514, %p515
      %p517 = scmp.ne.s32.totalorder %s508, %s509
      %p518 = scmp.eq.s32.totalorder %s47, 0
      %p519 = por %p517, %p518
      %p520 = scmp.ne.s32.totalorder %s508, %s509
      %p521 = scmp.eq.s32.totalorder %s48, 3
      %p522 = por %p520, %p521
      %p524 = scmp.ne.s32.totalorder %s509, %s523
      %p525 = scmp.eq.s32.totalorder %s48, 0
      %p526 = por %p524, %p525
      %s527 = ssub.s32 %s49, %s61
      %s528 = ssub.s32 %s50, %s57
      %s529 = sor.u32 %s527, %s528
      %p530 = scmp.eq.s32.totalorder %s529, 0
      %s532 = sadd.s32 %s531, 1
      %s533 = scalar_select %p530, %s531, %s532
      %p536 = pneg %p530
      %p537 = scmp.eq.s32.totalorder %s42, 3
      %p538 = por %p536, %p537
      %p539 = scmp.ne.s32.totalorder %s531, %s534
      %p540 = scmp.eq.s32.totalorder %s42, 0
      %p541 = por %p539, %p540
      %p542 = scmp.ne.s32.totalorder %s531, %s534
      %p543 = scmp.eq.s32.totalorder %s47, 3
      %p544 = por %p542, %p543
      %p545 = scmp.ne.s32.totalorder %s534, %s535
      %p546 = scmp.eq.s32.totalorder %s47, 0
      %p547 = por %p545, %p546
      %p548 = scmp.ne.s32.totalorder %s534, %s535
      %p549 = scmp.eq.s32.totalorder %s48, 3
      %p550 = por %p548, %p549
      %p552 = scmp.ne.s32.totalorder %s535, %s551
      %p553 = scmp.eq.s32.totalorder %s48, 0
      %p554 = por %p552, %p553
      %p555 = scmp.le.s32.totalorder 1, %s42
      %p556 = scmp.lt.s32.totalorder %s42, 5
      %p557 = pnand %p555, %p556
      %p558 = pneg %p557
      // Predicated region
      $region9: #{tpu_custom_call.1} parent=5 // pred_check
        _
      $region10: #{tpu_custom_call.1} parent=5 // pred_check_branch
        %560 = sbr.rel (%p557) target = $region12
      $region11: #{tpu_custom_call.1} parent=5 // pred_region
        %s561 = ssub.s32 %s42, 1
        // Predicated region
        $region13: #{tpu_custom_call.1} parent=11 // pred_check
          %p562 = pneg %p183
        $region14: #{tpu_custom_call.1} parent=11 // pred_check_branch
          %564 = sbr.rel (%p562) target = $region16
        $region15: #{tpu_custom_call.1} parent=11 // pred_region
          %566 = vsyncadd [#allocation9], 0
          %s567 = sshll.u32 %s4, 4
          %s568 = int_to_ptr.hbm [resolvable:$true] %s567
          %s569 = sshll.u32 [#allocation10], 4
          %s570 = int_to_ptr.vmem [resolvable:$true] %s569
          %575 = dma.hbm_to_vmem [thread:$0]  %s568, 1024, %s570, [#allocation9], 64, 64, 4
        $region16: #{tpu_custom_call.1} parent=11 // pred_fallthru
          _
        // Predicated region
        $region17: #{tpu_custom_call.1} parent=11 // pred_check
          %p576 = pneg %p204
        $region18: #{tpu_custom_call.1} parent=11 // pred_check_branch
          %578 = sbr.rel (%p576) target = $region20
        $region19: #{tpu_custom_call.1} parent=11 // pred_region
          _
        $region20: #{tpu_custom_call.1} parent=11 // pred_fallthru
          _
        // Predicated region
        $region21: #{tpu_custom_call.1} parent=11 // pred_check
          %p579 = pneg %p225
        $region22: #{tpu_custom_call.1} parent=11 // pred_check_branch
          %581 = sbr.rel (%p579) target = $region24
        $region23: #{tpu_custom_call.1} parent=11 // pred_region
          %583 = vsyncadd [#allocation12], 0
          %s584 = sshll.u32 %s6, 4
          %s585 = int_to_ptr.hbm [resolvable:$true] %s584
          %s586 = sshll.u32 [#allocation11], 4
          %s587 = int_to_ptr.vmem [resolvable:$true] %s586
          %592 = dma.hbm_to_vmem [thread:$0]  %s585, 1024, %s587, [#allocation12], 64, 64, 4
        $region24: #{tpu_custom_call.1} parent=11 // pred_fallthru
          _
        // Predicated region
        $region25: #{tpu_custom_call.1} parent=11 // pred_check
          %p593 = pneg %p246
        $region26: #{tpu_custom_call.1} parent=11 // pred_check_branch
          %595 = sbr.rel (%p593) target = $region28
        $region27: #{tpu_custom_call.1} parent=11 // pred_region
          _
        $region28: #{tpu_custom_call.1} parent=11 // pred_fallthru
          _
        // Predicated region
        $region29: #{tpu_custom_call.1} parent=11 // pred_check
          %p596 = pneg %p267
        $region30: #{tpu_custom_call.1} parent=11 // pred_check_branch
          %598 = sbr.rel (%p596) target = $region32
        $region31: #{tpu_custom_call.1} parent=11 // pred_region
          %600 = vsyncadd [#allocation12], 0
          %s601 = sshll.u32 %s8, 4
          %s602 = int_to_ptr.hbm [resolvable:$true] %s601
          %s603 = sshll.u32 [#allocation13], 4
          %s604 = int_to_ptr.vmem [resolvable:$true] %s603
          %609 = dma.hbm_to_vmem [thread:$0]  %s602, 1024, %s604, [#allocation12], 64, 64, 4
        $region32: #{tpu_custom_call.1} parent=11 // pred_fallthru
          _
        // Predicated region
        $region33: #{tpu_custom_call.1} parent=11 // pred_check
          %p610 = pneg %p288
        $region34: #{tpu_custom_call.1} parent=11 // pred_check_branch
          %612 = sbr.rel (%p610) target = $region36
        $region35: #{tpu_custom_call.1} parent=11 // pred_region
          _
        $region36: #{tpu_custom_call.1} parent=11 // pred_fallthru
          _
        // Predicated region
        $region37: #{tpu_custom_call.1} parent=11 // pred_check
          %p613 = pneg %p309
        $region38: #{tpu_custom_call.1} parent=11 // pred_check_branch
          %615 = sbr.rel (%p613) target = $region40
        $region39: #{tpu_custom_call.1} parent=11 // pred_region
          _
        $region40: #{tpu_custom_call.1} parent=11 // pred_fallthru
          _
        // Predicated region
        $region41: #{tpu_custom_call.1} parent=11 // pred_check
          %p616 = pneg %p330
        $region42: #{tpu_custom_call.1} parent=11 // pred_check_branch
          %618 = sbr.rel (%p616) target = $region44
        $region43: #{tpu_custom_call.1} parent=11 // pred_region
          %620 = vsyncadd [#allocation15], 0
          %s621 = sshll.u32 %s11, 4
          %s622 = int_to_ptr.hbm [resolvable:$true] %s621
          %s623 = sshll.u32 [#allocation14], 4
          %s624 = int_to_ptr.vmem [resolvable:$true] %s623
          %629 = dma.hbm_to_vmem [thread:$0]  %s622, 1024, %s624, [#allocation15], 64, 64, 4
        $region44: #{tpu_custom_call.1} parent=11 // pred_fallthru
          _
        // Predicated region
        $region45: #{tpu_custom_call.1} parent=11 // pred_check
          %p630 = pneg %p351
        $region46: #{tpu_custom_call.1} parent=11 // pred_check_branch
          %632 = sbr.rel (%p630) target = $region48
        $region47: #{tpu_custom_call.1} parent=11 // pred_region
          _
        $region48: #{tpu_custom_call.1} parent=11 // pred_fallthru
          _
        // Predicated region
        $region49: #{tpu_custom_call.1} parent=11 // pred_check
          %p633 = pneg %p372
        $region50: #{tpu_custom_call.1} parent=11 // pred_check_branch
          %635 = sbr.rel (%p633) target = $region52
        $region51: #{tpu_custom_call.1} parent=11 // pred_region
          _
        $region52: #{tpu_custom_call.1} parent=11 // pred_fallthru
          _
        // Predicated region
        $region53: #{tpu_custom_call.1} parent=11 // pred_check
          %p636 = pneg %p393
        $region54: #{tpu_custom_call.1} parent=11 // pred_check_branch
          %638 = sbr.rel (%p636) target = $region56
        $region55: #{tpu_custom_call.1} parent=11 // pred_region
          _
        $region56: #{tpu_custom_call.1} parent=11 // pred_fallthru
          _
        // Predicated region
        $region57: #{tpu_custom_call.1} parent=11 // pred_check
          %p639 = pneg %p414
        $region58: #{tpu_custom_call.1} parent=11 // pred_check_branch
          %641 = sbr.rel (%p639) target = $region60
        $region59: #{tpu_custom_call.1} parent=11 // pred_region
          %643 = vsyncadd [#allocation15], 0
          %s644 = sshll.u32 %s15, 4
          %s645 = int_to_ptr.hbm [resolvable:$true] %s644
          %s646 = sshll.u32 [#allocation16], 4
          %s647 = int_to_ptr.vmem [resolvable:$true] %s646
          %652 = dma.hbm_to_vmem [thread:$0]  %s645, 2048, %s647, [#allocation15], 128, 128, 8
        $region60: #{tpu_custom_call.1} parent=11 // pred_fallthru
          _
        // Predicated region
        $region61: #{tpu_custom_call.1} parent=11 // pred_check
          %p653 = pneg %p435
        $region62: #{tpu_custom_call.1} parent=11 // pred_check_branch
          %655 = sbr.rel (%p653) target = $region64
        $region63: #{tpu_custom_call.1} parent=11 // pred_region
          _
        $region64: #{tpu_custom_call.1} parent=11 // pred_fallthru
          _
        // Predicated region
        $region65: #{tpu_custom_call.1} parent=11 // pred_check
          %p656 = pneg %p456
        $region66: #{tpu_custom_call.1} parent=11 // pred_check_branch
          %658 = sbr.rel (%p656) target = $region68
        $region67: #{tpu_custom_call.1} parent=11 // pred_region
          %660 = vsyncadd [#allocation18], 0
          %s661 = sshll.u32 %s17, 4
          %s662 = int_to_ptr.hbm [resolvable:$true] %s661
          %s663 = sshll.u32 [#allocation17], 4
          %s664 = int_to_ptr.vmem [resolvable:$true] %s663
          %669 = dma.hbm_to_vmem [thread:$0]  %s662, 2048, %s664, [#allocation18], 64, 64, 4
        $region68: #{tpu_custom_call.1} parent=11 // pred_fallthru
          _
        // Predicated region
        $region69: #{tpu_custom_call.1} parent=11 // pred_check
          %p670 = pneg %p477
        $region70: #{tpu_custom_call.1} parent=11 // pred_check_branch
          %672 = sbr.rel (%p670) target = $region72
        $region71: #{tpu_custom_call.1} parent=11 // pred_region
          _
        $region72: #{tpu_custom_call.1} parent=11 // pred_fallthru
          _
        // Predicated region
        $region73: #{tpu_custom_call.1} parent=11 // pred_check
          %p673 = pneg %p498
        $region74: #{tpu_custom_call.1} parent=11 // pred_check_branch
          %675 = sbr.rel (%p673) target = $region76
        $region75: #{tpu_custom_call.1} parent=11 // pred_region
          _
        $region76: #{tpu_custom_call.1} parent=11 // pred_fallthru
          _
        // Predicated region
        $region77: #{tpu_custom_call.1} parent=11 // pred_check
          %p676 = pneg %p519
        $region78: #{tpu_custom_call.1} parent=11 // pred_check_branch
          %678 = sbr.rel (%p676) target = $region80
        $region79: #{tpu_custom_call.1} parent=11 // pred_region
          _
        $region80: #{tpu_custom_call.1} parent=11 // pred_fallthru
          _
      $region12: #{tpu_custom_call.1} parent=5 // pred_fallthru
        _
      %p679 = scmp.lt.s32.totalorder %s42, 4
      // Predicated region
      $region81: #{tpu_custom_call.1} parent=5 // pred_check
        %p680 = pneg %p679
      $region82: #{tpu_custom_call.1} parent=5 // pred_check_branch
        %682 = sbr.rel (%p680) target = $region84
      $region83: #{tpu_custom_call.1} parent=5 // pred_region
        // Predicated region
        $region85: #{tpu_custom_call.1} parent=83 // pred_check
          %p683 = pneg %p76
        $region86: #{tpu_custom_call.1} parent=83 // pred_check_branch
          %685 = sbr.rel (%p683) target = $region88
        $region87: #{tpu_custom_call.1} parent=83 // pred_region
          %s686 = sand.u32 %s66, 1
          %s687 = scalar_lea.sflag [#allocation3], %s686
          %s688 = sand.u32 %s66, 1
          %s689 = smul.addr %s688, 16
          %s690 = scalar_lea.vmem [#allocation2], %s689
          %s691 = smul.u32 2, %s50
          %693 = vsyncadd %s687, 0
          %s694 = smul.addr %s49, 4
          %s695 = sadd.s32 %s691, %s694
          %s696 = smul.addr %s695, 8
          %s697 = scalar_lea.hbm %s0, %s696
          %s698 = sshll.u32 %s697, 4
          %s699 = int_to_ptr.hbm [resolvable:$true] %s698
          %s700 = sshll.u32 %s690, 4
          %s701 = int_to_ptr.vmem [resolvable:$true] %s700
          %706 = dma.hbm_to_vmem [thread:$0]  %s699, 256, %s701, %s687, 128, 128, 8
        $region88: #{tpu_custom_call.1} parent=83 // pred_fallthru
          _
        // Predicated region
        $region89: #{tpu_custom_call.1} parent=83 // pred_check
          %p707 = pneg %p102
        $region90: #{tpu_custom_call.1} parent=83 // pred_check_branch
          %709 = sbr.rel (%p707) target = $region92
        $region91: #{tpu_custom_call.1} parent=83 // pred_region
          %s710 = sand.u32 %s42, 1
          %s711 = scalar_lea.sflag [#allocation6], %s710
          %s712 = sand.u32 %s92, 1
          %s713 = smul.addr %s712, 32
          %s714 = scalar_lea.vmem [#allocation5], %s713
          %716 = vsyncadd %s711, 0
          %s717 = smul.addr %s49, 4
          %s718 = smul.addr %s717, 8
          %s719 = scalar_lea.hbm %s1, %s718
          %s720 = sshll.u32 %s719, 4
          %s721 = int_to_ptr.hbm [resolvable:$true] %s720
          %s722 = sshll.u32 %s714, 4
          %s723 = int_to_ptr.vmem [resolvable:$true] %s722
          %728 = dma.hbm_to_vmem [thread:$0]  %s721, 512, %s723, %s711, 128, 128, 8
        $region92: #{tpu_custom_call.1} parent=83 // pred_fallthru
          _
        // Predicated region
        $region93: #{tpu_custom_call.1} parent=83 // pred_check
          %p729 = pneg %p128
        $region94: #{tpu_custom_call.1} parent=83 // pred_check_branch
          %731 = sbr.rel (%p729) target = $region96
        $region95: #{tpu_custom_call.1} parent=83 // pred_region
          %s732 = sand.u32 %s42, 1
          %s733 = scalar_lea.sflag [#allocation6], %s732
          %s734 = sand.u32 %s118, 1
          %s735 = scalar_lea.vmem [#allocation7], %s734
          %737 = vsyncadd %s733, 0
          %s738 = scalar_lea.hbm %s2, %s49
          %s740 = sshll.u32 %s738, 4
          %s741 = int_to_ptr.hbm [resolvable:$true] %s740
          %s742 = sshll.u32 %s735, 4
          %s743 = int_to_ptr.vmem [resolvable:$true] %s742
          %745 = dma.hbm_to_vmem [thread:$0]  %s741, 16, %s743, %s733
        $region96: #{tpu_custom_call.1} parent=83 // pred_fallthru
          _
        // Predicated region
        $region97: #{tpu_custom_call.1} parent=83 // pred_check
          %p746 = pneg %p156
        $region98: #{tpu_custom_call.1} parent=83 // pred_check_branch
          %748 = sbr.rel (%p746) target = $region100
        $region99: #{tpu_custom_call.1} parent=83 // pred_region
          %s749 = sand.u32 %s42, 1
          %s750 = scalar_lea.sflag [#allocation9], %s749
          %s751 = sand.u32 %s146, 1
          %s752 = smul.addr %s751, 8
          %s753 = scalar_lea.vmem [#allocation8], %s752
          %s754 = smul.u32 2, %s50
          %756 = vsyncadd %s750, 0
          %s757 = smul.addr %s49, 4
          %s758 = sadd.s32 %s754, %s757
          %s759 = smul.addr %s758, 4
          %s760 = scalar_lea.hbm %s3, %s759
          %s761 = sshll.u32 %s760, 4
          %s762 = int_to_ptr.hbm [resolvable:$true] %s761
          %s763 = sshll.u32 %s753, 4
          %s764 = int_to_ptr.vmem [resolvable:$true] %s763
          %769 = dma.hbm_to_vmem [thread:$0]  %s762, 128, %s764, %s750, 64, 64, 4
        $region100: #{tpu_custom_call.1} parent=83 // pred_fallthru
          _
      $region84: #{tpu_custom_call.1} parent=5 // pred_fallthru
        _
      %p770 = scmp.le.s32.totalorder 1, %s42
      %p771 = scmp.lt.s32.totalorder %s42, 5
      %p772 = pnand %p770, %p771
      %p773 = pneg %p772
      // Predicated region
      $region101: #{tpu_custom_call.1} parent=5 // pred_check
        _
      $region102: #{tpu_custom_call.1} parent=5 // pred_check_branch
        %775 = sbr.rel (%p772) target = $region104
      $region103: #{tpu_custom_call.1} parent=5 // pred_region
        %s776 = ssub.s32 %s42, 1
        %s777 = sand.u32 %s69, 1
        %s778 = scalar_lea.sflag [#allocation3], %s777
        %s779 = sand.u32 %s69, 1
        %s780 = smul.addr %s779, 16
        %s781 = scalar_lea.vmem [#allocation2], %s780
        // Predicated region
        $region105: #{tpu_custom_call.1} parent=103 // pred_check
          %p782 = pneg %p82
        $region106: #{tpu_custom_call.1} parent=103 // pred_check_branch
          %784 = sbr.rel (%p782) target = $region108
        $region107: #{tpu_custom_call.1} parent=103 // pred_region
          %786 = dma.done %s778, 256
        $region108: #{tpu_custom_call.1} parent=103 // pred_fallthru
          _
        %s787 = sand.u32 %s47, 1
        %s788 = scalar_lea.sflag [#allocation6], %s787
        %s789 = sand.u32 %s95, 1
        %s790 = smul.addr %s789, 32
        %s791 = scalar_lea.vmem [#allocation5], %s790
        // Predicated region
        $region109: #{tpu_custom_call.1} parent=103 // pred_check
          %p792 = pneg %p108
        $region110: #{tpu_custom_call.1} parent=103 // pred_check_branch
          %794 = sbr.rel (%p792) target = $region112
        $region111: #{tpu_custom_call.1} parent=103 // pred_region
          %796 = dma.done %s788, 512
        $region112: #{tpu_custom_call.1} parent=103 // pred_fallthru
          _
        %s797 = sand.u32 %s47, 1
        %s798 = scalar_lea.sflag [#allocation6], %s797
        %s799 = sand.u32 %s121, 1
        %s800 = scalar_lea.vmem [#allocation7], %s799
        // Predicated region
        $region113: #{tpu_custom_call.1} parent=103 // pred_check
          %p801 = pneg %p134
        $region114: #{tpu_custom_call.1} parent=103 // pred_check_branch
          %803 = sbr.rel (%p801) target = $region116
        $region115: #{tpu_custom_call.1} parent=103 // pred_region
          %805 = dma.done %s798, 16
        $region116: #{tpu_custom_call.1} parent=103 // pred_fallthru
          _
        %s806 = sand.u32 %s47, 1
        %s807 = scalar_lea.sflag [#allocation9], %s806
        %s808 = sand.u32 %s149, 1
        %s809 = smul.addr %s808, 8
        %s810 = scalar_lea.vmem [#allocation8], %s809
        // Predicated region
        $region117: #{tpu_custom_call.1} parent=103 // pred_check
          %p811 = pneg %p162
        $region118: #{tpu_custom_call.1} parent=103 // pred_check_branch
          %813 = sbr.rel (%p811) target = $region120
        $region119: #{tpu_custom_call.1} parent=103 // pred_region
          %815 = dma.done %s807, 128
        $region120: #{tpu_custom_call.1} parent=103 // pred_fallthru
          _
        // Predicated region
        $region121: #{tpu_custom_call.1} parent=103 // pred_check
          %p816 = pneg %p183
        $region122: #{tpu_custom_call.1} parent=103 // pred_check_branch
          %818 = sbr.rel (%p816) target = $region124
        $region123: #{tpu_custom_call.1} parent=103 // pred_region
          %820 = dma.done [#allocation9], 1024
        $region124: #{tpu_custom_call.1} parent=103 // pred_fallthru
          _
        // Predicated region
        $region125: #{tpu_custom_call.1} parent=103 // pred_check
          %p821 = pneg %p225
        $region126: #{tpu_custom_call.1} parent=103 // pred_check_branch
          %823 = sbr.rel (%p821) target = $region128
        $region127: #{tpu_custom_call.1} parent=103 // pred_region
          %825 = dma.done [#allocation12], 1024
        $region128: #{tpu_custom_call.1} parent=103 // pred_fallthru
          _
        // Predicated region
        $region129: #{tpu_custom_call.1} parent=103 // pred_check
          %p826 = pneg %p267
        $region130: #{tpu_custom_call.1} parent=103 // pred_check_branch
          %828 = sbr.rel (%p826) target = $region132
        $region131: #{tpu_custom_call.1} parent=103 // pred_region
          %830 = dma.done [#allocation12], 1024
        $region132: #{tpu_custom_call.1} parent=103 // pred_fallthru
          _
        // Predicated region
        $region133: #{tpu_custom_call.1} parent=103 // pred_check
          %p831 = pneg %p330
        $region134: #{tpu_custom_call.1} parent=103 // pred_check_branch
          %833 = sbr.rel (%p831) target = $region136
        $region135: #{tpu_custom_call.1} parent=103 // pred_region
          %835 = dma.done [#allocation15], 1024
        $region136: #{tpu_custom_call.1} parent=103 // pred_fallthru
          _
        // Predicated region
        $region137: #{tpu_custom_call.1} parent=103 // pred_check
          %p836 = pneg %p414
        $region138: #{tpu_custom_call.1} parent=103 // pred_check_branch
          %838 = sbr.rel (%p836) target = $region140
        $region139: #{tpu_custom_call.1} parent=103 // pred_region
          %840 = dma.done [#allocation15], 2048
        $region140: #{tpu_custom_call.1} parent=103 // pred_fallthru
          _
        // Predicated region
        $region141: #{tpu_custom_call.1} parent=103 // pred_check
          %p841 = pneg %p456
        $region142: #{tpu_custom_call.1} parent=103 // pred_check_branch
          %843 = sbr.rel (%p841) target = $region144
        $region143: #{tpu_custom_call.1} parent=103 // pred_region
          %845 = dma.done [#allocation18], 2048
        $region144: #{tpu_custom_call.1} parent=103 // pred_fallthru
          _
        %s846 = sand.u32 %s69, 1
        %s847 = scalar_lea.sflag [#allocation3], %s846
        %s848 = sand.u32 %s69, 1
        %s849 = smul.addr %s848, 16
        %s850 = scalar_lea.vmem [#allocation2], %s849
        %p851 = pneg %p82
        %p852 = pneg %p79
        %s853 = sand.u32 %s47, 1
        %s854 = scalar_lea.sflag [#allocation6], %s853
        %s855 = sand.u32 %s95, 1
        %s856 = smul.addr %s855, 32
        %s857 = scalar_lea.vmem [#allocation5], %s856
        %p858 = pneg %p108
        %p859 = pneg %p105
        %s860 = sand.u32 %s47, 1
        %s861 = scalar_lea.sflag [#allocation6], %s860
        %s862 = sand.u32 %s121, 1
        %s863 = scalar_lea.vmem [#allocation7], %s862
        %p864 = pneg %p134
        %p865 = pneg %p131
        %s866 = sand.u32 %s47, 1
        %s867 = scalar_lea.sflag [#allocation9], %s866
        %s868 = sand.u32 %s149, 1
        %s869 = smul.addr %s868, 8
        %s870 = scalar_lea.vmem [#allocation8], %s869
        %p871 = pneg %p162
        %p872 = pneg %p159
        %p873 = pneg %p183
        %p874 = pneg %p180
        %p875 = pneg %p204
        %p876 = pneg %p201
        %p877 = pneg %p225
        %p878 = pneg %p222
        %p879 = pneg %p246
        %p880 = pneg %p243
        %p881 = pneg %p267
        %p882 = pneg %p264
        %p883 = pneg %p288
        %p884 = pneg %p285
        %p885 = pneg %p309
        %p886 = pneg %p306
        %p887 = pneg %p330
        %p888 = pneg %p327
        %p889 = pneg %p351
        %p890 = pneg %p348
        %p891 = pneg %p372
        %p892 = pneg %p369
        %p893 = pneg %p393
        %p894 = pneg %p390
        %p895 = pneg %p414
        %p896 = pneg %p411
        %p897 = pneg %p435
        %p898 = pneg %p432
        %p899 = pneg %p456
        %p900 = pneg %p453
        %p901 = pneg %p477
        %p902 = pneg %p474
        %p903 = pneg %p498
        %p904 = pneg %p495
        %p905 = pneg %p519
        %p906 = pneg %p516
        %p907 = pneg %p547
        %p908 = pneg %p544
        %s909 = sand.u32 %s534, 1
        %s910 = scalar_lea.sflag [#allocation4], %s909
        %s911 = sand.u32 %s534, 1
        %s912 = smul.addr %s911, 16
        %s913 = scalar_lea.vmem [#allocation19], %s912
        %s914 = smul.u32 2, %s52
        %s915 = smul.u32 2, %s52
        %s916 = smul.u32 2, %s52
        %v918 = vld [vmem:[%s781] sm:$0xff]
        %v919 = vld [vmem:[%s781 + $0x8] sm:$0xff]
        %v920 = vld [vmem:[%s791] sm:$0xff]
        %v921 = vld [vmem:[%s791 + $0x8] sm:$0xff]
        %v922 = vld [vmem:[%s791 + $0x10] sm:$0xff]
        %v923 = vld [vmem:[%s791 + $0x18] sm:$0xff]
        %v924 = vpack.c.bf16 %v919, %v918
        %v925 = vpack.c.bf16 %v921, %v920
        %v926 = vpack.c.bf16 %v923, %v922
        %v927 = vld [vmem:[#allocation10] sm:$0xf]
        %v928 = vld [vmem:[#allocation10 + $0x4] sm:$0xf]
        %v929 = vld [vmem:[#allocation10 + $0x8] sm:$0xf]
        %v930 = vld [vmem:[#allocation10 + $0xc] sm:$0xf]
        %v931 = vld [vmem:[#allocation10 + $0x10] sm:$0xf]
        %v932 = vld [vmem:[#allocation10 + $0x14] sm:$0xf]
        %v933 = vld [vmem:[#allocation10 + $0x18] sm:$0xf]
        %v934 = vld [vmem:[#allocation10 + $0x1c] sm:$0xf]
        %v935 = vld [vmem:[#allocation10 + $0x20] sm:$0xf]
        %v936 = vld [vmem:[#allocation10 + $0x24] sm:$0xf]
        %v937 = vld [vmem:[#allocation10 + $0x28] sm:$0xf]
        %v938 = vld [vmem:[#allocation10 + $0x2c] sm:$0xf]
        %v939 = vld [vmem:[#allocation10 + $0x30] sm:$0xf]
        %v940 = vld [vmem:[#allocation10 + $0x34] sm:$0xf]
        %v941 = vld [vmem:[#allocation10 + $0x38] sm:$0xf]
        %v942 = vld [vmem:[#allocation10 + $0x3c] sm:$0xf]
        %v943 = vld [vmem:[%s5] sm:$0x1]
        %v945 = vperm.slane %v943, 0
        %v963 = vunpack.c.l.b16 %v927
        %v964 = vunpack.c.l.b16 %v928
        %v965 = vunpack.c.l.b16 %v929
        %v966 = vunpack.c.l.b16 %v930
        %v967 = vunpack.c.l.b16 %v931
        %v968 = vunpack.c.l.b16 %v932
        %v969 = vunpack.c.l.b16 %v933
        %v970 = vunpack.c.l.b16 %v934
        %v971 = vunpack.c.l.b16 %v935
        %v972 = vunpack.c.l.b16 %v936
        %v973 = vunpack.c.l.b16 %v937
        %v974 = vunpack.c.l.b16 %v938
        %v975 = vunpack.c.l.b16 %v939
        %v976 = vunpack.c.l.b16 %v940
        %v977 = vunpack.c.l.b16 %v941
        %v978 = vunpack.c.l.b16 %v942
        %v979 = vpack.c.b16 %v964, %v963
        %v980 = vpack.c.b16 %v966, %v965
        %v981 = vpack.c.b16 %v968, %v967
        %v982 = vpack.c.b16 %v970, %v969
        %v983 = vpack.c.b16 %v972, %v971
        %v984 = vpack.c.b16 %v974, %v973
        %v985 = vpack.c.b16 %v976, %v975
        %v986 = vpack.c.b16 %v978, %v977
        %995 = vmatpush.bf16.msra.mxu0 %v986
        %996 = vmatpush.bf16.msra.mxu0 %v985
        %997 = vmatpush.bf16.msra.mxu0 %v984
        %998 = vmatpush.bf16.msra.mxu0 %v983
        %999 = vmatpush.bf16.msra.mxu0 %v982
        %1000 = vmatpush.bf16.msra.mxu0 %v981
        %1001 = vmatpush.bf16.msra.mxu0 %v980
        %1002 = vmatpush.bf16.msra.mxu0 %v979
        %1003 = vmatmul.bf16.gmra.mxu0 %v924
        %v1004 = vpop.f32.mrf.mxu0
        %v1005 = vadd.f32 %v945, %v1004
        %v1006 = vpop.f32.mrf.mxu0
        %v1007 = vadd.f32 %v945, %v1006
        %1008 = vdwg.mxu0
        %v1009 = vmul.f32 %v1005, 0.088388346
        %v1010 = vmul.f32 %v1007, 0.088388346
        %v1011 = vld [vmem:[#allocation11] sm:$0xf]
        %v1012 = vld [vmem:[#allocation11 + $0x4] sm:$0xf]
        %v1013 = vld [vmem:[#allocation11 + $0x8] sm:$0xf]
        %v1014 = vld [vmem:[#allocation11 + $0xc] sm:$0xf]
        %v1015 = vld [vmem:[#allocation11 + $0x10] sm:$0xf]
        %v1016 = vld [vmem:[#allocation11 + $0x14] sm:$0xf]
        %v1017 = vld [vmem:[#allocation11 + $0x18] sm:$0xf]
        %v1018 = vld [vmem:[#allocation11 + $0x1c] sm:$0xf]
        %v1019 = vld [vmem:[#allocation11 + $0x20] sm:$0xf]
        %v1020 = vld [vmem:[#allocation11 + $0x24] sm:$0xf]
        %v1021 = vld [vmem:[#allocation11 + $0x28] sm:$0xf]
        %v1022 = vld [vmem:[#allocation11 + $0x2c] sm:$0xf]
        %v1023 = vld [vmem:[#allocation11 + $0x30] sm:$0xf]
        %v1024 = vld [vmem:[#allocation11 + $0x34] sm:$0xf]
        %v1025 = vld [vmem:[#allocation11 + $0x38] sm:$0xf]
        %v1026 = vld [vmem:[#allocation11 + $0x3c] sm:$0xf]
        %v1027 = vld [vmem:[%s7] sm:$0x1]
        %v1029 = vperm.slane %v1027, 0
        %v1047 = vunpack.c.l.b16 %v1011
        %v1048 = vunpack.c.l.b16 %v1012
        %v1049 = vunpack.c.l.b16 %v1013
        %v1050 = vunpack.c.l.b16 %v1014
        %v1051 = vunpack.c.l.b16 %v1015
        %v1052 = vunpack.c.l.b16 %v1016
        %v1053 = vunpack.c.l.b16 %v1017
        %v1054 = vunpack.c.l.b16 %v1018
        %v1055 = vunpack.c.l.b16 %v1019
        %v1056 = vunpack.c.l.b16 %v1020
        %v1057 = vunpack.c.l.b16 %v1021
        %v1058 = vunpack.c.l.b16 %v1022
        %v1059 = vunpack.c.l.b16 %v1023
        %v1060 = vunpack.c.l.b16 %v1024
        %v1061 = vunpack.c.l.b16 %v1025
        %v1062 = vunpack.c.l.b16 %v1026
        %v1063 = vpack.c.b16 %v1048, %v1047
        %v1064 = vpack.c.b16 %v1050, %v1049
        %v1065 = vpack.c.b16 %v1052, %v1051
        %v1066 = vpack.c.b16 %v1054, %v1053
        %v1067 = vpack.c.b16 %v1056, %v1055
        %v1068 = vpack.c.b16 %v1058, %v1057
        %v1069 = vpack.c.b16 %v1060, %v1059
        %v1070 = vpack.c.b16 %v1062, %v1061
        %1079 = vmatpush.bf16.msra.mxu0 %v1070
        %1080 = vmatpush.bf16.msra.mxu0 %v1069
        %1081 = vmatpush.bf16.msra.mxu0 %v1068
        %1082 = vmatpush.bf16.msra.mxu0 %v1067
        %1083 = vmatpush.bf16.msra.mxu0 %v1066
        %1084 = vmatpush.bf16.msra.mxu0 %v1065
        %1085 = vmatpush.bf16.msra.mxu0 %v1064
        %1086 = vmatpush.bf16.msra.mxu0 %v1063
        %1087 = vmatmul.bf16.gmra.mxu0 %v925
        %v1088 = vpop.f32.mrf.mxu0
        %v1089 = vadd.f32 %v1029, %v1088
        %v1090 = vpop.f32.mrf.mxu0
        %v1091 = vadd.f32 %v1029, %v1090
        %1092 = vmatmul.bf16.gmra.mxu0 %v926
        %v1093 = vpop.f32.mrf.mxu0
        %v1094 = vadd.f32 %v1029, %v1093
        %v1095 = vpop.f32.mrf.mxu0
        %v1096 = vadd.f32 %v1029, %v1095
        %1097 = vdwg.mxu0
        %v1098 = vld [vmem:[#allocation13] sm:$0xf]
        %v1099 = vld [vmem:[#allocation13 + $0x4] sm:$0xf]
        %v1100 = vld [vmem:[#allocation13 + $0x8] sm:$0xf]
        %v1101 = vld [vmem:[#allocation13 + $0xc] sm:$0xf]
        %v1102 = vld [vmem:[#allocation13 + $0x10] sm:$0xf]
        %v1103 = vld [vmem:[#allocation13 + $0x14] sm:$0xf]
        %v1104 = vld [vmem:[#allocation13 + $0x18] sm:$0xf]
        %v1105 = vld [vmem:[#allocation13 + $0x1c] sm:$0xf]
        %v1106 = vld [vmem:[#allocation13 + $0x20] sm:$0xf]
        %v1107 = vld [vmem:[#allocation13 + $0x24] sm:$0xf]
        %v1108 = vld [vmem:[#allocation13 + $0x28] sm:$0xf]
        %v1109 = vld [vmem:[#allocation13 + $0x2c] sm:$0xf]
        %v1110 = vld [vmem:[#allocation13 + $0x30] sm:$0xf]
        %v1111 = vld [vmem:[#allocation13 + $0x34] sm:$0xf]
        %v1112 = vld [vmem:[#allocation13 + $0x38] sm:$0xf]
        %v1113 = vld [vmem:[#allocation13 + $0x3c] sm:$0xf]
        %v1114 = vld [vmem:[%s9] sm:$0x1]
        %v1116 = vperm.slane %v1114, 0
        %v1134 = vunpack.c.l.b16 %v1098
        %v1135 = vunpack.c.l.b16 %v1099
        %v1136 = vunpack.c.l.b16 %v1100
        %v1137 = vunpack.c.l.b16 %v1101
        %v1138 = vunpack.c.l.b16 %v1102
        %v1139 = vunpack.c.l.b16 %v1103
        %v1140 = vunpack.c.l.b16 %v1104
        %v1141 = vunpack.c.l.b16 %v1105
        %v1142 = vunpack.c.l.b16 %v1106
        %v1143 = vunpack.c.l.b16 %v1107
        %v1144 = vunpack.c.l.b16 %v1108
        %v1145 = vunpack.c.l.b16 %v1109
        %v1146 = vunpack.c.l.b16 %v1110
        %v1147 = vunpack.c.l.b16 %v1111
        %v1148 = vunpack.c.l.b16 %v1112
        %v1149 = vunpack.c.l.b16 %v1113
        %v1150 = vpack.c.b16 %v1135, %v1134
        %v1151 = vpack.c.b16 %v1137, %v1136
        %v1152 = vpack.c.b16 %v1139, %v1138
        %v1153 = vpack.c.b16 %v1141, %v1140
        %v1154 = vpack.c.b16 %v1143, %v1142
        %v1155 = vpack.c.b16 %v1145, %v1144
        %v1156 = vpack.c.b16 %v1147, %v1146
        %v1157 = vpack.c.b16 %v1149, %v1148
        %1166 = vmatpush.bf16.msra.mxu0 %v1157
        %1167 = vmatpush.bf16.msra.mxu0 %v1156
        %1168 = vmatpush.bf16.msra.mxu0 %v1155
        %1169 = vmatpush.bf16.msra.mxu0 %v1154
        %1170 = vmatpush.bf16.msra.mxu0 %v1153
        %1171 = vmatpush.bf16.msra.mxu0 %v1152
        %1172 = vmatpush.bf16.msra.mxu0 %v1151
        %1173 = vmatpush.bf16.msra.mxu0 %v1150
        %1174 = vmatmul.bf16.gmra.mxu0 %v925
        %v1175 = vpop.f32.mrf.mxu0
        %v1176 = vadd.f32 %v1116, %v1175
        %v1177 = vpop.f32.mrf.mxu0
        %v1178 = vadd.f32 %v1116, %v1177
        %1179 = vmatmul.bf16.gmra.mxu0 %v926
        %v1180 = vpop.f32.mrf.mxu0
        %v1181 = vadd.f32 %v1116, %v1180
        %v1182 = vpop.f32.mrf.mxu0
        %v1183 = vadd.f32 %v1116, %v1182
        %1184 = vdwg.mxu0
        %v1185 = vpack.c.bf16 %v1010, %v1009
        %v1186 = vpack.c.bf16 %v1091, %v1089
        %v1187 = vpack.c.bf16 %v1096, %v1094
        %v1188 = vpack.c.bf16 %v1178, %v1176
        %v1189 = vpack.c.bf16 %v1183, %v1181
        %v1190 = vld [vmem:[%s10] sm:$0x1]
        %v1192 = vperm.slane %v1190, 0
        %v1194 = vmul.f32 %v1009, %v1192
        %v1195 = vmul.f32 %v1010, %v1192
        %1196 = vadd.xlane.f32.xlu0 %v1194
        %v1197 = vpop.xlane.xlu0 %1196
        %1198 = vadd.xlane.f32.xlu0 %v1195
        %v1199 = vpop.xlane.xlu0 %1198
        %v1200 = vld [vmem:[%s810] sm:$0xf]
        %v1201 = vld [vmem:[%s810 + $0x4] sm:$0xf]
        %v1202 = vunpack.c.l.bf16 %v1200
        %v1203 = vunpack.c.l.bf16 %v1201
        %v1204 = vmul.f32 %v1197, %v1202
        %v1205 = vmul.f32 %v1199, %v1203
        %1206 = vmatpush.bf16.xpose.msra.mxu0 0
        %1207 = vmatpush.bf16.xpose.msra.mxu0 0
        %1208 = vmatpush.bf16.xpose.msra.mxu0 0
        %1209 = vmatpush.bf16.xpose.msra.mxu0 0
        %1210 = vmatpush.bf16.xpose.msra.mxu0 0
        %1211 = vmatpush.bf16.xpose.msra.mxu0 0
        %1212 = vmatpush.bf16.xpose.msra.mxu0 %v1187
        %1213 = vmatpush.bf16.xpose.msra.mxu0 %v1186
        %1214 = vmatmul.bf16.gmra.mxu0 %v1185
        %v1215 = vpop.f32.mrf.mxu0
        %v1216 = vadd.f32 %v1204, %v1215
        %v1217 = vpop.f32.mrf.mxu0
        %v1218 = vadd.f32 %v1205, %v1217
        %1219 = vdwg.mxu0
        %v1220 = vld [vmem:[%s800] sm:$0x1]
        %v1222 = vperm.slane %v1220, 0
        %v1224 = vadd.f32 %v1216, %v1222
        %v1225 = vadd.f32 %v1218, %v1222
        %vm1226 = vcmask 261120
        %v1227 = vsel %vm1226, %v1224, -inf
        %1228 = vmax.xlane.f32.xlu0 %v1227
        %v1229 = vpop.xlane.xlu0 %1228
        %v1230 = vsel %vm1226, %v1225, -inf
        %1231 = vmax.xlane.f32.xlu0 %v1230
        %v1232 = vpop.xlane.xlu0 %1231
        %v1233 = vsub.f32 %v1224, %v1229
        %v1234 = vsub.f32 %v1225, %v1232
        %v1235 = vmul.f32 %v1233, 1.442695
        %v1236 = vpow.pop %v1235
        %v1237 = vmul.f32 %v1234, 1.442695
        %v1238 = vpow.pop %v1237
        %v1239 = vsel %vm1226, %v1236, 0.0
        %1240 = vadd.xlane.f32.xlu0 %v1239
        %v1241 = vpop.xlane.xlu0 %1240
        %v1242 = vsel %vm1226, %v1238, 0.0
        %1243 = vadd.xlane.f32.xlu0 %v1242
        %v1244 = vpop.xlane.xlu0 %1243
        %v1245 = vrcp.pop %v1241
        %v1246 = vrcp.pop %v1244
        %v1247 = vmul.f32 %v1236, %v1245
        %v1248 = vmul.f32 %v1238, %v1246
        %v1249 = vpack.c.bf16 %v1248, %v1247
        %v1251 = vsel %vm1226, %v1249, 0
        %1253 = vmatpush.bf16.msra.mxu0 0
        %1254 = vmatpush.bf16.msra.mxu0 0
        %1255 = vmatpush.bf16.msra.mxu0 0
        %1256 = vmatpush.bf16.msra.mxu0 0
        %1257 = vmatpush.bf16.msra.mxu0 0
        %1258 = vmatpush.bf16.msra.mxu0 0
        %1259 = vmatpush.bf16.msra.mxu0 %v1189
        %1260 = vmatpush.bf16.msra.mxu0 %v1188
        %1261 = vmatmul.bf16.gmra.mxu0 %v1251
        %v1262 = vpop.f32.mrf.mxu0
        %v1263 = vadd.f32 0.0, %v1262
        %v1264 = vpop.f32.mrf.mxu0
        %v1265 = vadd.f32 0.0, %v1264
        %1266 = vdwg.mxu0
        %v1267 = vpack.c.bf16 %v1265, %v1263
        %v1268 = vld [vmem:[#allocation14] sm:$0xf]
        %v1269 = vld [vmem:[#allocation14 + $0x4] sm:$0xf]
        %v1270 = vld [vmem:[#allocation14 + $0x8] sm:$0xf]
        %v1271 = vld [vmem:[#allocation14 + $0xc] sm:$0xf]
        %v1272 = vld [vmem:[#allocation14 + $0x10] sm:$0xf]
        %v1273 = vld [vmem:[#allocation14 + $0x14] sm:$0xf]
        %v1274 = vld [vmem:[#allocation14 + $0x18] sm:$0xf]
        %v1275 = vld [vmem:[#allocation14 + $0x1c] sm:$0xf]
        %v1276 = vld [vmem:[#allocation14 + $0x20] sm:$0xf]
        %v1277 = vld [vmem:[#allocation14 + $0x24] sm:$0xf]
        %v1278 = vld [vmem:[#allocation14 + $0x28] sm:$0xf]
        %v1279 = vld [vmem:[#allocation14 + $0x2c] sm:$0xf]
        %v1280 = vld [vmem:[#allocation14 + $0x30] sm:$0xf]
        %v1281 = vld [vmem:[#allocation14 + $0x34] sm:$0xf]
        %v1282 = vld [vmem:[#allocation14 + $0x38] sm:$0xf]
        %v1283 = vld [vmem:[#allocation14 + $0x3c] sm:$0xf]
        %v1284 = vld [vmem:[%s12] sm:$0x1]
        %v1286 = vperm.slane %v1284, 0
        %v1304 = vunpack.c.l.b16 %v1268
        %v1305 = vunpack.c.l.b16 %v1269
        %v1306 = vunpack.c.l.b16 %v1270
        %v1307 = vunpack.c.l.b16 %v1271
        %v1308 = vunpack.c.l.b16 %v1272
        %v1309 = vunpack.c.l.b16 %v1273
        %v1310 = vunpack.c.l.b16 %v1274
        %v1311 = vunpack.c.l.b16 %v1275
        %v1312 = vunpack.c.l.b16 %v1276
        %v1313 = vunpack.c.l.b16 %v1277
        %v1314 = vunpack.c.l.b16 %v1278
        %v1315 = vunpack.c.l.b16 %v1279
        %v1316 = vunpack.c.l.b16 %v1280
        %v1317 = vunpack.c.l.b16 %v1281
        %v1318 = vunpack.c.l.b16 %v1282
        %v1319 = vunpack.c.l.b16 %v1283
        %v1320 = vpack.c.b16 %v1305, %v1304
        %v1321 = vpack.c.b16 %v1307, %v1306
        %v1322 = vpack.c.b16 %v1309, %v1308
        %v1323 = vpack.c.b16 %v1311, %v1310
        %v1324 = vpack.c.b16 %v1313, %v1312
        %v1325 = vpack.c.b16 %v1315, %v1314
        %v1326 = vpack.c.b16 %v1317, %v1316
        %v1327 = vpack.c.b16 %v1319, %v1318
        %1336 = vmatpush.bf16.msra.mxu0 %v1327
        %1337 = vmatpush.bf16.msra.mxu0 %v1326
        %1338 = vmatpush.bf16.msra.mxu0 %v1325
        %1339 = vmatpush.bf16.msra.mxu0 %v1324
        %1340 = vmatpush.bf16.msra.mxu0 %v1323
        %1341 = vmatpush.bf16.msra.mxu0 %v1322
        %1342 = vmatpush.bf16.msra.mxu0 %v1321
        %1343 = vmatpush.bf16.msra.mxu0 %v1320
        %1344 = vmatmul.bf16.gmra.mxu0 %v1267
        %v1345 = vpop.f32.mrf.mxu0
        %v1346 = vadd.f32 %v1286, %v1345
        %v1347 = vpop.f32.mrf.mxu0
        %v1348 = vadd.f32 %v1286, %v1347
        %1349 = vdwg.mxu0
        %v1350 = vadd.f32 %v1346, %v918
        %v1351 = vadd.f32 %v1348, %v919
        %1352 = vadd.xlane.f32.xlu0 %v1350
        %v1353 = vpop.xlane.xlu0 %1352
        %1354 = vadd.xlane.f32.xlu0 %v1351
        %v1355 = vpop.xlane.xlu0 %1354
        %v1356 = vrcp.pop 128.0
        %v1357 = vmul.f32 128.0, %v1356
        %v1358 = vsub.f32 1.0, %v1357
        %v1359 = vmul.f32 %v1356, %v1358
        %v1360 = vadd.f32 %v1356, %v1359
        %vm1361 = vweird.f32 %v1356
        %v1362 = vsel %vm1361, %v1356, %v1360
        %v1363 = vmul.f32 %v1353, %v1362
        %v1364 = vmul.f32 %v1355, %v1362
        %v1365 = vmul.f32 %v1350, %v1350
        %v1366 = vmul.f32 %v1351, %v1351
        %1367 = vadd.xlane.f32.xlu0 %v1365
        %v1368 = vpop.xlane.xlu0 %1367
        %1369 = vadd.xlane.f32.xlu0 %v1366
        %v1370 = vpop.xlane.xlu0 %1369
        %v1371 = vmul.f32 %v1368, %v1362
        %v1372 = vmul.f32 %v1370, %v1362
        %v1373 = vmul.f32 %v1363, %v1363
        %v1374 = vmul.f32 %v1364, %v1364
        %v1375 = vsub.f32 %v1371, %v1373
        %v1376 = vsub.f32 %v1372, %v1374
        %v1377 = vsub.f32 %v1350, %v1363
        %v1378 = vsub.f32 %v1351, %v1364
        %v1379 = vadd.f32 %v1375, 1e-12
        %v1380 = vadd.f32 %v1376, 1e-12
        %v1381 = vrsqrt.pop %v1379
        %v1382 = vmul.f32 %v1381, %v1379
        %v1383 = vmul.f32 %v1382, %v1381
        %v1384 = vmul.f32 0.5, %v1383
        %v1385 = vsub.f32 1.5, %v1384
        %v1386 = vmul.f32 %v1381, %v1385
        %vm1387 = vweird.f32 %v1379
        %vm1388 = vweird.f32 %v1381
        %vm1389 = vmor %vm1387, %vm1388
        %v1390 = vsel %vm1389, %v1381, %v1386
        %v1391 = vrsqrt.pop %v1380
        %v1392 = vmul.f32 %v1391, %v1380
        %v1393 = vmul.f32 %v1392, %v1391
        %v1394 = vmul.f32 0.5, %v1393
        %v1395 = vsub.f32 1.5, %v1394
        %v1396 = vmul.f32 %v1391, %v1395
        %vm1397 = vweird.f32 %v1380
        %vm1398 = vweird.f32 %v1391
        %vm1399 = vmor %vm1397, %vm1398
        %v1400 = vsel %vm1399, %v1391, %v1396
        %v1401 = vmul.f32 %v1377, %v1390
        %v1402 = vmul.f32 %v1378, %v1400
        %v1403 = vld [vmem:[%s13] sm:$0x1]
        %v1405 = vperm.slane %v1403, 0
        %v1407 = vmul.f32 %v1401, %v1405
        %v1408 = vmul.f32 %v1402, %v1405
        %v1409 = vld [vmem:[%s14] sm:$0x1]
        %v1411 = vperm.slane %v1409, 0
        %v1413 = vadd.f32 %v1407, %v1411
        %v1414 = vadd.f32 %v1408, %v1411
        %v1415 = vpack.c.bf16 %v1414, %v1413
        %v1416 = vld [vmem:[#allocation16] sm:$0xff]
        %v1417 = vld [vmem:[#allocation16 + $0x8] sm:$0xff]
        %v1418 = vld [vmem:[#allocation16 + $0x10] sm:$0xff]
        %v1419 = vld [vmem:[#allocation16 + $0x18] sm:$0xff]
        %v1420 = vld [vmem:[#allocation16 + $0x20] sm:$0xff]
        %v1421 = vld [vmem:[#allocation16 + $0x28] sm:$0xff]
        %v1422 = vld [vmem:[#allocation16 + $0x30] sm:$0xff]
        %v1423 = vld [vmem:[#allocation16 + $0x38] sm:$0xff]
        %v1424 = vld [vmem:[#allocation16 + $0x40] sm:$0xff]
        %v1425 = vld [vmem:[#allocation16 + $0x48] sm:$0xff]
        %v1426 = vld [vmem:[#allocation16 + $0x50] sm:$0xff]
        %v1427 = vld [vmem:[#allocation16 + $0x58] sm:$0xff]
        %v1428 = vld [vmem:[#allocation16 + $0x60] sm:$0xff]
        %v1429 = vld [vmem:[#allocation16 + $0x68] sm:$0xff]
        %v1430 = vld [vmem:[#allocation16 + $0x70] sm:$0xff]
        %v1431 = vld [vmem:[#allocation16 + $0x78] sm:$0xff]
        %v1432 = vld [vmem:[%s16] sm:$0x3]
        %v1434 = vperm.slane %v1432, 0
        %v1435 = vperm.slane %v1432, 1
        %v1454 = vunpack.c.l.b16 %v1416
        %v1455 = vunpack.c.h.b16 %v1416
        %v1456 = vunpack.c.l.b16 %v1417
        %v1457 = vunpack.c.h.b16 %v1417
        %v1458 = vunpack.c.l.b16 %v1418
        %v1459 = vunpack.c.h.b16 %v1418
        %v1460 = vunpack.c.l.b16 %v1419
        %v1461 = vunpack.c.h.b16 %v1419
        %v1462 = vunpack.c.l.b16 %v1420
        %v1463 = vunpack.c.h.b16 %v1420
        %v1464 = vunpack.c.l.b16 %v1421
        %v1465 = vunpack.c.h.b16 %v1421
        %v1466 = vunpack.c.l.b16 %v1422
        %v1467 = vunpack.c.h.b16 %v1422
        %v1468 = vunpack.c.l.b16 %v1423
        %v1469 = vunpack.c.h.b16 %v1423
        %v1470 = vunpack.c.l.b16 %v1424
        %v1471 = vunpack.c.h.b16 %v1424
        %v1472 = vunpack.c.l.b16 %v1425
        %v1473 = vunpack.c.h.b16 %v1425
        %v1474 = vunpack.c.l.b16 %v1426
        %v1475 = vunpack.c.h.b16 %v1426
        %v1476 = vunpack.c.l.b16 %v1427
        %v1477 = vunpack.c.h.b16 %v1427
        %v1478 = vunpack.c.l.b16 %v1428
        %v1479 = vunpack.c.h.b16 %v1428
        %v1480 = vunpack.c.l.b16 %v1429
        %v1481 = vunpack.c.h.b16 %v1429
        %v1482 = vunpack.c.l.b16 %v1430
        %v1483 = vunpack.c.h.b16 %v1430
        %v1484 = vunpack.c.l.b16 %v1431
        %v1485 = vunpack.c.h.b16 %v1431
        %v1486 = vpack.c.b16 %v1456, %v1454
        %v1487 = vpack.c.b16 %v1457, %v1455
        %v1488 = vpack.c.b16 %v1460, %v1458
        %v1489 = vpack.c.b16 %v1461, %v1459
        %v1490 = vpack.c.b16 %v1464, %v1462
        %v1491 = vpack.c.b16 %v1465, %v1463
        %v1492 = vpack.c.b16 %v1468, %v1466
        %v1493 = vpack.c.b16 %v1469, %v1467
        %v1494 = vpack.c.b16 %v1472, %v1470
        %v1495 = vpack.c.b16 %v1473, %v1471
        %v1496 = vpack.c.b16 %v1476, %v1474
        %v1497 = vpack.c.b16 %v1477, %v1475
        %v1498 = vpack.c.b16 %v1480, %v1478
        %v1499 = vpack.c.b16 %v1481, %v1479
        %v1500 = vpack.c.b16 %v1484, %v1482
        %v1501 = vpack.c.b16 %v1485, %v1483
        %1518 = vmatpush.bf16.msra.mxu0 %v1500
        %1519 = vmatpush.bf16.msra.mxu0 %v1498
        %1520 = vmatpush.bf16.msra.mxu0 %v1496
        %1521 = vmatpush.bf16.msra.mxu0 %v1494
        %1522 = vmatpush.bf16.msra.mxu0 %v1492
        %1523 = vmatpush.bf16.msra.mxu0 %v1490
        %1524 = vmatpush.bf16.msra.mxu0 %v1488
        %1525 = vmatpush.bf16.msra.mxu0 %v1486
        %1526 = vmatmul.bf16.gmra.mxu0 %v1415
        %v1527 = vpop.f32.mrf.mxu0
        %v1528 = vadd.f32 %v1434, %v1527
        %v1529 = vpop.f32.mrf.mxu0
        %v1530 = vadd.f32 %v1434, %v1529
        %1531 = vdwg.mxu0
        %1532 = vmatpush.bf16.msra.mxu0 %v1501
        %1533 = vmatpush.bf16.msra.mxu0 %v1499
        %1534 = vmatpush.bf16.msra.mxu0 %v1497
        %1535 = vmatpush.bf16.msra.mxu0 %v1495
        %1536 = vmatpush.bf16.msra.mxu0 %v1493
        %1537 = vmatpush.bf16.msra.mxu0 %v1491
        %1538 = vmatpush.bf16.msra.mxu0 %v1489
        %1539 = vmatpush.bf16.msra.mxu0 %v1487
        %1540 = vmatmul.bf16.gmra.mxu0 %v1415
        %v1541 = vpop.f32.mrf.mxu0
        %v1542 = vadd.f32 %v1435, %v1541
        %v1543 = vpop.f32.mrf.mxu0
        %v1544 = vadd.f32 %v1435, %v1543
        %1545 = vdwg.mxu0
        %v1546 = vmul.f32 %v1528, 0.5
        %v1547 = vmul.f32 %v1542, 0.5
        %v1548 = vmul.f32 %v1530, 0.5
        %v1549 = vmul.f32 %v1544, 0.5
        %v1550 = vmul.f32 %v1528, 0.70710677
        %v1551 = vmul.f32 %v1542, 0.70710677
        %v1552 = vmul.f32 %v1530, 0.70710677
        %v1553 = vmul.f32 %v1544, 0.70710677
        %v1554 = vmul.f32 %v1550, %v1550
        %v1555 = vmin.f32 16.0, %v1554
        %v1556 = vmul.f32 %v1555, 2.1237322e-06
        %v1557 = vadd.f32 %v1556, 0.00028619796
        %v1558 = vmul.f32 %v1555, %v1557
        %v1559 = vadd.f32 %v1558, 0.0036580483
        %v1560 = vmul.f32 %v1555, %v1559
        %v1561 = vadd.f32 %v1560, 0.05243302
        %v1562 = vmul.f32 %v1555, %v1561
        %v1563 = vadd.f32 %v1562, 0.18741608
        %v1564 = vmul.f32 %v1555, %v1563
        %v1565 = vadd.f32 %v1564, 1.1283791
        %v1566 = vmul.f32 %v1550, %v1565
        %v1567 = vmul.f32 %v1555, 3.8918573e-05
        %v1568 = vadd.f32 %v1567, 0.001143296
        %v1569 = vmul.f32 %v1555, %v1568
        %v1570 = vadd.f32 %v1569, 0.014752088
        %v1571 = vmul.f32 %v1555, %v1570
        %v1572 = vadd.f32 %v1571, 0.112945676
        %v1573 = vmul.f32 %v1555, %v1572
        %v1574 = vadd.f32 %v1573, 0.4994258
        %v1575 = vmul.f32 %v1555, %v1574
        %v1576 = vadd.f32 %v1575, 1.0
        %v1577 = vrcp.pop %v1576
        %v1578 = vmul.f32 %v1576, %v1577
        %v1579 = vsub.f32 1.0, %v1578
        %v1580 = vmul.f32 %v1577, %v1579
        %v1581 = vadd.f32 %v1577, %v1580
        %vm1582 = vweird.f32 %v1576
        %vm1583 = vweird.f32 %v1577
        %vm1584 = vmor %vm1582, %vm1583
        %v1585 = vsel %vm1584, %v1577, %v1581
        %v1586 = vand.u32 2147483647, %v1576
        %vm1587 = vcmp.eq.f32.partialorder %v1586, 8.507059e+37
        %v1588 = vand.u32 %v1576, 2147483648
        %v1589 = vor.u32 1.1754944e-38, %v1588
        %v1590 = vsel %vm1587, %v1589, %v1585
        %v1591 = vmul.f32 %v1566, %v1590
        %v1592 = vmin.f32 %v1591, 1.0
        %v1593 = vmax.f32 %v1592, -1.0
        %v1594 = vmul.f32 %v1551, %v1551
        %v1595 = vmin.f32 16.0, %v1594
        %v1596 = vmul.f32 %v1595, 2.1237322e-06
        %v1597 = vadd.f32 %v1596, 0.00028619796
        %v1598 = vmul.f32 %v1595, %v1597
        %v1599 = vadd.f32 %v1598, 0.0036580483
        %v1600 = vmul.f32 %v1595, %v1599
        %v1601 = vadd.f32 %v1600, 0.05243302
        %v1602 = vmul.f32 %v1595, %v1601
        %v1603 = vadd.f32 %v1602, 0.18741608
        %v1604 = vmul.f32 %v1595, %v1603
        %v1605 = vadd.f32 %v1604, 1.1283791
        %v1606 = vmul.f32 %v1551, %v1605
        %v1607 = vmul.f32 %v1595, 3.8918573e-05
        %v1608 = vadd.f32 %v1607, 0.001143296
        %v1609 = vmul.f32 %v1595, %v1608
        %v1610 = vadd.f32 %v1609, 0.014752088
        %v1611 = vmul.f32 %v1595, %v1610
        %v1612 = vadd.f32 %v1611, 0.112945676
        %v1613 = vmul.f32 %v1595, %v1612
        %v1614 = vadd.f32 %v1613, 0.4994258
        %v1615 = vmul.f32 %v1595, %v1614
        %v1616 = vadd.f32 %v1615, 1.0
        %v1617 = vrcp.pop %v1616
        %v1618 = vmul.f32 %v1616, %v1617
        %v1619 = vsub.f32 1.0, %v1618
        %v1620 = vmul.f32 %v1617, %v1619
        %v1621 = vadd.f32 %v1617, %v1620
        %vm1622 = vweird.f32 %v1616
        %vm1623 = vweird.f32 %v1617
        %vm1624 = vmor %vm1622, %vm1623
        %v1625 = vsel %vm1624, %v1617, %v1621
        %v1626 = vand.u32 2147483647, %v1616
        %vm1627 = vcmp.eq.f32.partialorder %v1626, 8.507059e+37
        %v1628 = vand.u32 %v1616, 2147483648
        %v1629 = vor.u32 1.1754944e-38, %v1628
        %v1630 = vsel %vm1627, %v1629, %v1625
        %v1631 = vmul.f32 %v1606, %v1630
        %v1632 = vmin.f32 %v1631, 1.0
        %v1633 = vmax.f32 %v1632, -1.0
        %v1634 = vmul.f32 %v1552, %v1552
        %v1635 = vmin.f32 16.0, %v1634
        %v1636 = vmul.f32 %v1635, 2.1237322e-06
        %v1637 = vadd.f32 %v1636, 0.00028619796
        %v1638 = vmul.f32 %v1635, %v1637
        %v1639 = vadd.f32 %v1638, 0.0036580483
        %v1640 = vmul.f32 %v1635, %v1639
        %v1641 = vadd.f32 %v1640, 0.05243302
        %v1642 = vmul.f32 %v1635, %v1641
        %v1643 = vadd.f32 %v1642, 0.18741608
        %v1644 = vmul.f32 %v1635, %v1643
        %v1645 = vadd.f32 %v1644, 1.1283791
        %v1646 = vmul.f32 %v1552, %v1645
        %v1647 = vmul.f32 %v1635, 3.8918573e-05
        %v1648 = vadd.f32 %v1647, 0.001143296
        %v1649 = vmul.f32 %v1635, %v1648
        %v1650 = vadd.f32 %v1649, 0.014752088
        %v1651 = vmul.f32 %v1635, %v1650
        %v1652 = vadd.f32 %v1651, 0.112945676
        %v1653 = vmul.f32 %v1635, %v1652
        %v1654 = vadd.f32 %v1653, 0.4994258
        %v1655 = vmul.f32 %v1635, %v1654
        %v1656 = vadd.f32 %v1655, 1.0
        %v1657 = vrcp.pop %v1656
        %v1658 = vmul.f32 %v1656, %v1657
        %v1659 = vsub.f32 1.0, %v1658
        %v1660 = vmul.f32 %v1657, %v1659
        %v1661 = vadd.f32 %v1657, %v1660
        %vm1662 = vweird.f32 %v1656
        %vm1663 = vweird.f32 %v1657
        %vm1664 = vmor %vm1662, %vm1663
        %v1665 = vsel %vm1664, %v1657, %v1661
        %v1666 = vand.u32 2147483647, %v1656
        %vm1667 = vcmp.eq.f32.partialorder %v1666, 8.507059e+37
        %v1668 = vand.u32 %v1656, 2147483648
        %v1669 = vor.u32 1.1754944e-38, %v1668
        %v1670 = vsel %vm1667, %v1669, %v1665
        %v1671 = vmul.f32 %v1646, %v1670
        %v1672 = vmin.f32 %v1671, 1.0
        %v1673 = vmax.f32 %v1672, -1.0
        %v1674 = vmul.f32 %v1553, %v1553
        %v1675 = vmin.f32 16.0, %v1674
        %v1676 = vmul.f32 %v1675, 2.1237322e-06
        %v1677 = vadd.f32 %v1676, 0.00028619796
        %v1678 = vmul.f32 %v1675, %v1677
        %v1679 = vadd.f32 %v1678, 0.0036580483
        %v1680 = vmul.f32 %v1675, %v1679
        %v1681 = vadd.f32 %v1680, 0.05243302
        %v1682 = vmul.f32 %v1675, %v1681
        %v1683 = vadd.f32 %v1682, 0.18741608
        %v1684 = vmul.f32 %v1675, %v1683
        %v1685 = vadd.f32 %v1684, 1.1283791
        %v1686 = vmul.f32 %v1553, %v1685
        %v1687 = vmul.f32 %v1675, 3.8918573e-05
        %v1688 = vadd.f32 %v1687, 0.001143296
        %v1689 = vmul.f32 %v1675, %v1688
        %v1690 = vadd.f32 %v1689, 0.014752088
        %v1691 = vmul.f32 %v1675, %v1690
        %v1692 = vadd.f32 %v1691, 0.112945676
        %v1693 = vmul.f32 %v1675, %v1692
        %v1694 = vadd.f32 %v1693, 0.4994258
        %v1695 = vmul.f32 %v1675, %v1694
        %v1696 = vadd.f32 %v1695, 1.0
        %v1697 = vrcp.pop %v1696
        %v1698 = vmul.f32 %v1696, %v1697
        %v1699 = vsub.f32 1.0, %v1698
        %v1700 = vmul.f32 %v1697, %v1699
        %v1701 = vadd.f32 %v1697, %v1700
        %vm1702 = vweird.f32 %v1696
        %vm1703 = vweird.f32 %v1697
        %vm1704 = vmor %vm1702, %vm1703
        %v1705 = vsel %vm1704, %v1697, %v1701
        %v1706 = vand.u32 2147483647, %v1696
        %vm1707 = vcmp.eq.f32.partialorder %v1706, 8.507059e+37
        %v1708 = vand.u32 %v1696, 2147483648
        %v1709 = vor.u32 1.1754944e-38, %v1708
        %v1710 = vsel %vm1707, %v1709, %v1705
        %v1711 = vmul.f32 %v1686, %v1710
        %v1712 = vmin.f32 %v1711, 1.0
        %v1713 = vmax.f32 %v1712, -1.0
        %v1714 = vadd.f32 %v1593, 1.0
        %v1715 = vadd.f32 %v1633, 1.0
        %v1716 = vadd.f32 %v1673, 1.0
        %v1717 = vadd.f32 %v1713, 1.0
        %v1718 = vmul.f32 %v1546, %v1714
        %v1719 = vmul.f32 %v1547, %v1715
        %v1720 = vmul.f32 %v1548, %v1716
        %v1721 = vmul.f32 %v1549, %v1717
        %v1722 = vpack.c.bf16 %v1720, %v1718
        %v1723 = vpack.c.bf16 %v1721, %v1719
        %v1724 = vld [vmem:[#allocation17] sm:$0xf]
        %v1725 = vld [vmem:[#allocation17 + $0x4] sm:$0xf]
        %v1726 = vld [vmem:[#allocation17 + $0x8] sm:$0xf]
        %v1727 = vld [vmem:[#allocation17 + $0xc] sm:$0xf]
        %v1728 = vld [vmem:[#allocation17 + $0x10] sm:$0xf]
        %v1729 = vld [vmem:[#allocation17 + $0x14] sm:$0xf]
        %v1730 = vld [vmem:[#allocation17 + $0x18] sm:$0xf]
        %v1731 = vld [vmem:[#allocation17 + $0x1c] sm:$0xf]
        %v1732 = vld [vmem:[#allocation17 + $0x20] sm:$0xf]
        %v1733 = vld [vmem:[#allocation17 + $0x24] sm:$0xf]
        %v1734 = vld [vmem:[#allocation17 + $0x28] sm:$0xf]
        %v1735 = vld [vmem:[#allocation17 + $0x2c] sm:$0xf]
        %v1736 = vld [vmem:[#allocation17 + $0x30] sm:$0xf]
        %v1737 = vld [vmem:[#allocation17 + $0x34] sm:$0xf]
        %v1738 = vld [vmem:[#allocation17 + $0x38] sm:$0xf]
        %v1739 = vld [vmem:[#allocation17 + $0x3c] sm:$0xf]
        %v1740 = vld [vmem:[#allocation17 + $0x40] sm:$0xf]
        %v1741 = vld [vmem:[#allocation17 + $0x44] sm:$0xf]
        %v1742 = vld [vmem:[#allocation17 + $0x48] sm:$0xf]
        %v1743 = vld [vmem:[#allocation17 + $0x4c] sm:$0xf]
        %v1744 = vld [vmem:[#allocation17 + $0x50] sm:$0xf]
        %v1745 = vld [vmem:[#allocation17 + $0x54] sm:$0xf]
        %v1746 = vld [vmem:[#allocation17 + $0x58] sm:$0xf]
        %v1747 = vld [vmem:[#allocation17 + $0x5c] sm:$0xf]
        %v1748 = vld [vmem:[#allocation17 + $0x60] sm:$0xf]
        %v1749 = vld [vmem:[#allocation17 + $0x64] sm:$0xf]
        %v1750 = vld [vmem:[#allocation17 + $0x68] sm:$0xf]
        %v1751 = vld [vmem:[#allocation17 + $0x6c] sm:$0xf]
        %v1752 = vld [vmem:[#allocation17 + $0x70] sm:$0xf]
        %v1753 = vld [vmem:[#allocation17 + $0x74] sm:$0xf]
        %v1754 = vld [vmem:[#allocation17 + $0x78] sm:$0xf]
        %v1755 = vld [vmem:[#allocation17 + $0x7c] sm:$0xf]
        %v1756 = vld [vmem:[%s18] sm:$0x1]
        %v1758 = vperm.slane %v1756, 0
        %v1792 = vunpack.c.l.b16 %v1724
        %v1793 = vunpack.c.l.b16 %v1725
        %v1794 = vunpack.c.l.b16 %v1726
        %v1795 = vunpack.c.l.b16 %v1727
        %v1796 = vunpack.c.l.b16 %v1728
        %v1797 = vunpack.c.l.b16 %v1729
        %v1798 = vunpack.c.l.b16 %v1730
        %v1799 = vunpack.c.l.b16 %v1731
        %v1800 = vunpack.c.l.b16 %v1732
        %v1801 = vunpack.c.l.b16 %v1733
        %v1802 = vunpack.c.l.b16 %v1734
        %v1803 = vunpack.c.l.b16 %v1735
        %v1804 = vunpack.c.l.b16 %v1736
        %v1805 = vunpack.c.l.b16 %v1737
        %v1806 = vunpack.c.l.b16 %v1738
        %v1807 = vunpack.c.l.b16 %v1739
        %v1808 = vunpack.c.l.b16 %v1740
        %v1809 = vunpack.c.l.b16 %v1741
        %v1810 = vunpack.c.l.b16 %v1742
        %v1811 = vunpack.c.l.b16 %v1743
        %v1812 = vunpack.c.l.b16 %v1744
        %v1813 = vunpack.c.l.b16 %v1745
        %v1814 = vunpack.c.l.b16 %v1746
        %v1815 = vunpack.c.l.b16 %v1747
        %v1816 = vunpack.c.l.b16 %v1748
        %v1817 = vunpack.c.l.b16 %v1749
        %v1818 = vunpack.c.l.b16 %v1750
        %v1819 = vunpack.c.l.b16 %v1751
        %v1820 = vunpack.c.l.b16 %v1752
        %v1821 = vunpack.c.l.b16 %v1753
        %v1822 = vunpack.c.l.b16 %v1754
        %v1823 = vunpack.c.l.b16 %v1755
        %v1824 = vpack.c.b16 %v1793, %v1792
        %v1825 = vpack.c.b16 %v1795, %v1794
        %v1826 = vpack.c.b16 %v1797, %v1796
        %v1827 = vpack.c.b16 %v1799, %v1798
        %v1828 = vpack.c.b16 %v1801, %v1800
        %v1829 = vpack.c.b16 %v1803, %v1802
        %v1830 = vpack.c.b16 %v1805, %v1804
        %v1831 = vpack.c.b16 %v1807, %v1806
        %v1832 = vpack.c.b16 %v1809, %v1808
        %v1833 = vpack.c.b16 %v1811, %v1810
        %v1834 = vpack.c.b16 %v1813, %v1812
        %v1835 = vpack.c.b16 %v1815, %v1814
        %v1836 = vpack.c.b16 %v1817, %v1816
        %v1837 = vpack.c.b16 %v1819, %v1818
        %v1838 = vpack.c.b16 %v1821, %v1820
        %v1839 = vpack.c.b16 %v1823, %v1822
        %1856 = vmatpush.bf16.msra.mxu0 %v1831
        %1857 = vmatpush.bf16.msra.mxu0 %v1830
        %1858 = vmatpush.bf16.msra.mxu0 %v1829
        %1859 = vmatpush.bf16.msra.mxu0 %v1828
        %1860 = vmatpush.bf16.msra.mxu0 %v1827
        %1861 = vmatpush.bf16.msra.mxu0 %v1826
        %1862 = vmatpush.bf16.msra.mxu0 %v1825
        %1863 = vmatpush.bf16.msra.mxu0 %v1824
        %1864 = vmatmul.bf16.gmra.mxu0 %v1722
        %v1865 = vpop.f32.mrf.mxu0
        %v1866 = vadd.f32 %v1758, %v1865
        %v1867 = vpop.f32.mrf.mxu0
        %v1868 = vadd.f32 %v1758, %v1867
        %1869 = vdwg.mxu0
        %1870 = vmatpush.bf16.msra.mxu0 %v1839
        %1871 = vmatpush.bf16.msra.mxu0 %v1838
        %1872 = vmatpush.bf16.msra.mxu0 %v1837
        %1873 = vmatpush.bf16.msra.mxu0 %v1836
        %1874 = vmatpush.bf16.msra.mxu0 %v1835
        %1875 = vmatpush.bf16.msra.mxu0 %v1834
        %1876 = vmatpush.bf16.msra.mxu0 %v1833
        %1877 = vmatpush.bf16.msra.mxu0 %v1832
        %1878 = vmatmul.bf16.gmra.mxu0 %v1723
        %v1879 = vpop.f32.mrf.mxu0
        %v1880 = vadd.f32 %v1866, %v1879
        %v1881 = vpop.f32.mrf.mxu0
        %v1882 = vadd.f32 %v1868, %v1881
        %1883 = vdwg.mxu0
        %v1884 = vadd.f32 %v1880, %v1413
        %v1885 = vadd.f32 %v1882, %v1414
        %1886 = vadd.xlane.f32.xlu0 %v1884
        %v1887 = vpop.xlane.xlu0 %1886
        %1888 = vadd.xlane.f32.xlu0 %v1885
        %v1889 = vpop.xlane.xlu0 %1888
        %v1890 = vmul.f32 %v1887, %v1362
        %v1891 = vmul.f32 %v1889, %v1362
        %v1892 = vmul.f32 %v1884, %v1884
        %v1893 = vmul.f32 %v1885, %v1885
        %1894 = vadd.xlane.f32.xlu0 %v1892
        %v1895 = vpop.xlane.xlu0 %1894
        %1896 = vadd.xlane.f32.xlu0 %v1893
        %v1897 = vpop.xlane.xlu0 %1896
        %v1898 = vmul.f32 %v1895, %v1362
        %v1899 = vmul.f32 %v1897, %v1362
        %v1900 = vmul.f32 %v1890, %v1890
        %v1901 = vmul.f32 %v1891, %v1891
        %v1902 = vsub.f32 %v1898, %v1900
        %v1903 = vsub.f32 %v1899, %v1901
        %v1904 = vsub.f32 %v1884, %v1890
        %v1905 = vsub.f32 %v1885, %v1891
        %v1906 = vadd.f32 %v1902, 1e-12
        %v1907 = vadd.f32 %v1903, 1e-12
        %v1908 = vrsqrt.pop %v1906
        %v1909 = vmul.f32 %v1908, %v1906
        %v1910 = vmul.f32 %v1909, %v1908
        %v1911 = vmul.f32 0.5, %v1910
        %v1912 = vsub.f32 1.5, %v1911
        %v1913 = vmul.f32 %v1908, %v1912
        %vm1914 = vweird.f32 %v1906
        %vm1915 = vweird.f32 %v1908
        %vm1916 = vmor %vm1914, %vm1915
        %v1917 = vsel %vm1916, %v1908, %v1913
        %v1918 = vrsqrt.pop %v1907
        %v1919 = vmul.f32 %v1918, %v1907
        %v1920 = vmul.f32 %v1919, %v1918
        %v1921 = vmul.f32 0.5, %v1920
        %v1922 = vsub.f32 1.5, %v1921
        %v1923 = vmul.f32 %v1918, %v1922
        %vm1924 = vweird.f32 %v1907
        %vm1925 = vweird.f32 %v1918
        %vm1926 = vmor %vm1924, %vm1925
        %v1927 = vsel %vm1926, %v1918, %v1923
        %v1928 = vmul.f32 %v1904, %v1917
        %v1929 = vmul.f32 %v1905, %v1927
        %v1930 = vld [vmem:[%s19] sm:$0x1]
        %v1932 = vperm.slane %v1930, 0
        %v1934 = vmul.f32 %v1928, %v1932
        %v1935 = vmul.f32 %v1929, %v1932
        %v1936 = vld [vmem:[%s20] sm:$0x1]
        %v1938 = vperm.slane %v1936, 0
        %v1940 = vadd.f32 %v1934, %v1938
        %v1941 = vadd.f32 %v1935, %v1938
        %1942 = vst [vmem:[%s913] sm:$0xff] %v1940
        %1943 = vst [vmem:[%s913 + $0x8] sm:$0xff] %v1941
        %s1944 = sand.u32 %s534, 1
        %s1945 = scalar_lea.sflag [#allocation4], %s1944
        %s1946 = sand.u32 %s534, 1
        %s1947 = smul.addr %s1946, 16
        %s1948 = scalar_lea.vmem [#allocation19], %s1947
        // Predicated region
        $region145: #{tpu_custom_call.1} parent=103 // pred_check
          %p1949 = pneg %p544
        $region146: #{tpu_custom_call.1} parent=103 // pred_check_branch
          %1951 = sbr.rel (%p1949) target = $region148
        $region147: #{tpu_custom_call.1} parent=103 // pred_region
          %s1952 = smul.u32 2, %s52
          %1954 = vsyncadd %s1945, 0
          %s1955 = smul.addr %s51, 4
          %s1956 = sadd.s32 %s1952, %s1955
          %s1957 = smul.addr %s1956, 8
          %s1958 = scalar_lea.hbm %s21, %s1957
          %s1959 = sshll.u32 %s1948, 4
          %s1960 = int_to_ptr.vmem [resolvable:$true] %s1959
          %s1961 = sshll.u32 %s1958, 4
          %s1962 = int_to_ptr.hbm [resolvable:$true] %s1961
          %1967 = dma.vmem_to_hbm [thread:$0]  %s1960, 256, %s1962, %s1945, 128, 128, 8
        $region148: #{tpu_custom_call.1} parent=103 // pred_fallthru
          _
      $region104: #{tpu_custom_call.1} parent=5 // pred_fallthru
        _
      %p1968 = scmp.le.s32.totalorder 2, %s42
      // Predicated region
      $region149: #{tpu_custom_call.1} parent=5 // pred_check
        %p1969 = pneg %p1968
      $region150: #{tpu_custom_call.1} parent=5 // pred_check_branch
        %1971 = sbr.rel (%p1969) target = $region152
      $region151: #{tpu_custom_call.1} parent=5 // pred_region
        %s1972 = ssub.s32 %s42, 2
        // Predicated region
        $region153: #{tpu_custom_call.1} parent=151 // pred_check
          %p1973 = pneg %p550
        $region154: #{tpu_custom_call.1} parent=151 // pred_check_branch
          %1975 = sbr.rel (%p1973) target = $region156
        $region155: #{tpu_custom_call.1} parent=151 // pred_region
          %s1976 = sand.u32 %s535, 1
          %s1977 = scalar_lea.sflag [#allocation4], %s1976
          %s1978 = sand.u32 %s535, 1
          %s1979 = smul.addr %s1978, 16
          %s1980 = scalar_lea.vmem [#allocation19], %s1979
          %1982 = dma.done %s1977, 256
        $region156: #{tpu_custom_call.1} parent=151 // pred_fallthru
          _
      $region152: #{tpu_custom_call.1} parent=5 // pred_fallthru
        _
    $region6: #{tpu_custom_call.1} parent=1 // loop_footer
      %s46 = sadd.s32 1, %s42
    $region7: #{tpu_custom_call.1} parent=1 // loop_footer_branch
      %41 = sbr.rel target = $region3
    $region8: #{tpu_custom_call.1} parent=1 // loop_exit
      _
    %1983 = vsyncpa [#allocation3], 1
    %s1984 = scalar_lea.sflag [#allocation3], 1
    %1985 = vsyncpa %s1984, 1
    %1986 = vsyncpa [#allocation6], 1
    %s1987 = scalar_lea.sflag [#allocation6], 1
    %1988 = vsyncpa %s1987, 1
    %1989 = vsyncpa [#allocation9], 1
    %s1990 = scalar_lea.sflag [#allocation9], 1
    %1991 = vsyncpa %s1990, 1
    %1992 = vsyncpa [#allocation12], 1
    %1993 = vsyncpa [#allocation15], 1
    %1994 = vsyncpa [#allocation18], 1
    %1995 = vsyncpa [#allocation4], 1
    %s1996 = scalar_lea.sflag [#allocation4], 1
    %1997 = vsyncpa %s1996, 1

</llo_original>
